<compile_context>
chip_gen: v7x
topology: tpu7x:2x2x1
jax: 0.10.0
libtpu: 0.0.40
codegen_flags: <defaults>
</compile_context>

<pallas_src>
import functools

import jax
import jax.numpy as jnp
from jax import lax
from jax.experimental import pallas as pl
from jax.experimental.pallas import tpu as pltpu

EPS = 1e-5
LANE = 128
VMEM_LIMIT = 32 * 1024 * 1024  # safe on v5e/v6e/v7x; tiles below use far less


def _round_up(x, m):
    return (x + m - 1) // m * m


def _pick_tile(m, target=512):
    """Largest tile (multiple of 8) from a candidate list that evenly divides m."""
    for t in (target, 512, 256, 128, 64, 32, 16, 8):
        if t <= m and m % t == 0:
            return t
    return m  # fallback: single full-extent block (always legal)


# ----------------------------- Pallas kernels ------------------------------ #

def _conv_stats_kernel(p_ref, w_ref, b_ref, y_ref, sum_ref, sq_ref):
    """Tile i of: y = patches @ W + b. Also accumulates per-channel sum / sumsq
    across the whole grid (sum/sq output blocks are grid-resident accumulators)."""
    y = jnp.dot(p_ref[...], w_ref[...], preferred_element_type=jnp.float32)
    y = y + b_ref[...]
    y_ref[...] = y

    @pl.when(pl.program_id(0) == 0)
    def _():
        sum_ref[...] = jnp.zeros_like(sum_ref)
        sq_ref[...] = jnp.zeros_like(sq_ref)

    # Single read of y: fused sum and sum-of-squares (var = E[y^2] - mu^2 later).
    sum_ref[...] += jnp.sum(y, axis=0, keepdims=True)
    sq_ref[...] += jnp.sum(y * y, axis=0, keepdims=True)


def _bn_relu_kernel(y_ref, scale_ref, shift_ref, o_ref):
    # y_pre * scale + shift == gamma * (y_pre - mu) / sqrt(var + eps) + beta
    o_ref[...] = jnp.maximum(y_ref[...] * scale_ref[...] + shift_ref[...], 0.0)


def _bn_add_relu_kernel(y_ref, scale_ref, shift_ref, skip_ref, o_ref):
    o_ref[...] = jnp.maximum(
        y_ref[...] * scale_ref[...] + shift_ref[...] + skip_ref[...], 0.0)


def _bn_proj_add_relu_kernel(y_ref, scale_ref, shift_ref, xs_ref, w3_ref,
                             b3_ref, o_ref):
    # 1x1-conv projection of the skip path fused into the epilogue (small K matmul).
    skip = jnp.dot(xs_ref[...], w3_ref[...], preferred_element_type=jnp.float32)
    skip = skip + b3_ref[...]
    o_ref[...] = jnp.maximum(
        y_ref[...] * scale_ref[...] + shift_ref[...] + skip, 0.0)


# --------------------------- pallas_call wrappers --------------------------- #

def _conv_with_stats(patches, w_mat, b_row, tm):
    m, k = patches.shape
    cp = w_mat.shape[1]
    return pl.pallas_call(
        _conv_stats_kernel,
        out_shape=(jax.ShapeDtypeStruct((m, cp), jnp.float32),
                   jax.ShapeDtypeStruct((1, cp), jnp.float32),
                   jax.ShapeDtypeStruct((1, cp), jnp.float32)),
        grid_spec=pltpu.PrefetchScalarGridSpec(
            num_scalar_prefetch=0,
            grid=(m // tm,),
            in_specs=[pl.BlockSpec((tm, k), lambda i: (i, 0)),
                      pl.BlockSpec((k, cp), lambda i: (0, 0)),   # weights resident
                      pl.BlockSpec((1, cp), lambda i: (0, 0))],  # bias resident
            out_specs=[pl.BlockSpec((tm, cp), lambda i: (i, 0)),
                       pl.BlockSpec((1, cp), lambda i: (0, 0)),  # sum accumulator
                       pl.BlockSpec((1, cp), lambda i: (0, 0))]  # sumsq accumulator
        ),
        compiler_params=pltpu.CompilerParams(
            dimension_semantics=("arbitrary",),   # stats accumulation => sequential
            vmem_limit_bytes=VMEM_LIMIT),
    )(patches, w_mat, b_row)


def _bn_relu(y_pre, scale, shift, tm):
    m, cp = y_pre.shape
    return pl.pallas_call(
        _bn_relu_kernel,
        out_shape=jax.ShapeDtypeStruct((m, cp), jnp.float32),
        grid_spec=pltpu.PrefetchScalarGridSpec(
            num_scalar_prefetch=0,
            grid=(m // tm,),
            in_specs=[pl.BlockSpec((tm, cp), lambda i: (i, 0)),
                      pl.BlockSpec((1, cp), lambda i: (0, 0)),
                      pl.BlockSpec((1, cp), lambda i: (0, 0))],
            out_specs=pl.BlockSpec((tm, cp), lambda i: (i, 0))),
        compiler_params=pltpu.CompilerParams(
            dimension_semantics=("parallel",),
            vmem_limit_bytes=VMEM_LIMIT),
    )(y_pre, scale, shift)


def _bn_add_relu(y_pre, scale, shift, skip, tm):
    m, cp = y_pre.shape
    return pl.pallas_call(
        _bn_add_relu_kernel,
        out_shape=jax.ShapeDtypeStruct((m, cp), jnp.float32),
        grid_spec=pltpu.PrefetchScalarGridSpec(
            num_scalar_prefetch=0,
            grid=(m // tm,),
            in_specs=[pl.BlockSpec((tm, cp), lambda i: (i, 0)),
                      pl.BlockSpec((1, cp), lambda i: (0, 0)),
                      pl.BlockSpec((1, cp), lambda i: (0, 0)),
                      pl.BlockSpec((tm, cp), lambda i: (i, 0))],
            out_specs=pl.BlockSpec((tm, cp), lambda i: (i, 0))),
        compiler_params=pltpu.CompilerParams(
            dimension_semantics=("parallel",),
            vmem_limit_bytes=VMEM_LIMIT),
    )(y_pre, scale, shift, skip)


def _bn_proj_add_relu(y_pre, scale, shift, xs, w3_mat, b3_row, tm):
    m, cp = y_pre.shape
    k3 = xs.shape[1]
    return pl.pallas_call(
        _bn_proj_add_relu_kernel,
        out_shape=jax.ShapeDtypeStruct((m, cp), jnp.float32),
        grid_spec=pltpu.PrefetchScalarGridSpec(
            num_scalar_prefetch=0,
            grid=(m // tm,),
            in_specs=[pl.BlockSpec((tm, cp), lambda i: (i, 0)),
                      pl.BlockSpec((1, cp), lambda i: (0, 0)),
                      pl.BlockSpec((1, cp), lambda i: (0, 0)),
                      pl.BlockSpec((tm, k3), lambda i: (i, 0)),
                      pl.BlockSpec((k3, cp), lambda i: (0, 0)),  # w3 resident
                      pl.BlockSpec((1, cp), lambda i: (0, 0))],  # b3 resident
            out_specs=pl.BlockSpec((tm, cp), lambda i: (i, 0))),
        compiler_params=pltpu.CompilerParams(
            dimension_semantics=("parallel",),
            vmem_limit_bytes=VMEM_LIMIT),
    )(y_pre, scale, shift, xs, w3_mat, b3_row)


# ------------------------------ JAX glue ----------------------------------- #

def _im2col(x_nhwc, k, stride, pad, dtype):
    """Extract KxK patches (tap-major, channel-minor) -> (N*Ho*Wo, K*K*C)."""
    n, h, w, c = x_nhwc.shape
    xp = jnp.pad(x_nhwc, ((0, 0), (pad, pad), (pad, pad), (0, 0)))
    ho = (h + 2 * pad - k) // stride + 1
    wo = (w + 2 * pad - k) // stride + 1
    cols = []
    for kh in range(k):
        for kw in range(k):
            cols.append(xp[:, kh:kh + stride * ho:stride, kw:kw + stride * wo:stride, :])
    patches = jnp.concatenate(cols, axis=-1)          # (N, Ho, Wo, K*K*C)
    return patches.reshape(n * ho * wo, k * k * c).astype(dtype), (n, ho, wo)


def _w_to_mat(w_oihw, cp, dtype):
    # (O, I, KH, KW) -> (KH*KW*I, O) im2col weight matrix, zero-padded to cp out cols.
    o = w_oihw.shape[0]
    wm = jnp.transpose(w_oihw, (2, 3, 1, 0)).reshape(-1, o)
    return jnp.pad(wm, ((0, 0), (0, cp - o))).astype(dtype)


def _row_pad(v, cp):
    # (C,) -> lane-dense (1, cp) f32 row, zero-padded.
    return jnp.pad(v.astype(jnp.float32), (0, cp - v.shape[0])).reshape(1, -1)


def _bn_stats_to_affine(s1, s2, gamma_row, beta_row, m):
    """Fold batch stats + BN affine into a single per-channel (scale, shift)."""
    mean = s1 / m
    var = jnp.maximum(s2 / m - mean * mean, 0.0)      # biased var (PyTorch training BN)
    inv = lax.rsqrt(var + EPS)
    scale = gamma_row * inv                           # zero for padded channels
    shift = beta_row - mean * scale
    return scale, shift


@functools.partial(jax.jit,
                   static_argnames=("use_1x1conv", "strides", "compute_dtype",
                                    "tm_target"))
def residual_forward(x_nchw, params, *, use_1x1conv, strides,
                     compute_dtype=jnp.float32, tm_target=512):
    x = jnp.transpose(x_nchw, (0, 2, 3, 1)).astype(jnp.float32)   # -> NHWC
    n, h, w, cin = x.shape
    cout = params["w1"].shape[0]
    cp = _round_up(cout, LANE)            # lane-dense channel padding for all stores

    # ---- conv1 + bn1 + relu -------------------------------------------------
    p1, (n_, ho, wo) = _im2col(x, 3, strides, 1, compute_dtype)
    m = n_ * ho * wo
    tm = _pick_tile(m, tm_target)
    w1m = _w_to_mat(params["w1"], cp, compute_dtype)
    y1_pre, s1, q1 = _conv_with_stats(p1, w1m, _row_pad(params["b1"], cp), tm)
    sc1, sh1 = _bn_stats_to_affine(s1, q1, _row_pad(params["g1"], cp),
                                   _row_pad(params["be1"], cp), m)
    y1 = _bn_relu(y1_pre, sc1, sh1, tm)

    # ---- conv2 + bn2 (+ skip) + relu ---------------------------------------
    # Slice the channel padding off before re-expanding with im2col so conv2's
    # patch matrix does not carry 9x the zero-padded channels through HBM.
    y1_nhwc = y1[:, :cout].reshape(n_, ho, wo, cout)
    p2, _ = _im2col(y1_nhwc, 3, 1, 1, compute_dtype)
    w2m = _w_to_mat(params["w2"], cp, compute_dtype)
    y2_pre, s2, q2 = _conv_with_stats(p2, w2m, _row_pad(params["b2"], cp), tm)
    sc2, sh2 = _bn_stats_to_affine(s2, q2, _row_pad(params["g2"], cp),
                                   _row_pad(params["be2"], cp), m)

    if use_1x1conv:
        # 1x1 conv, stride s: spatial subsample in the wrapper, matmul fused in-kernel.
        xs = x[:, ::strides, ::strides, :].reshape(m, cin).astype(compute_dtype)
        w3m = jnp.pad(params["w3"].reshape(cout, cin).T,
                      ((0, 0), (0, cp - cout))).astype(compute_dtype)
        out = _bn_proj_add_relu(y2_pre, sc2, sh2, xs, w3m,
                                _row_pad(params["b3"], cp), tm)
    else:
        if strides != 1 or cin != cout:
            raise ValueError("identity skip requires strides == 1 and cin == cout")
        skip = jnp.pad(x.reshape(m, cin), ((0, 0), (0, cp - cin)))
        out = _bn_add_relu(y2_pre, sc2, sh2, skip, tm)

    out = out[:, :cout].reshape(n_, ho, wo, cout)
    return jnp.transpose(out, (0, 3, 1, 2))                        # back to NCHW


# ------------------------- pure-JAX reference ------------------------------ #

def _conv_ref(x, w, b, stride, pad):
    y = lax.conv_general_dilated(
        x, w, (stride, stride), [(pad, pad), (pad, pad)],
        dimension_numbers=("NCHW", "OIHW", "NCHW"))
    return y + b[None, :, None, None]


def _bn_ref(y, g, b):
    mu = y.mean(axis=(0, 2, 3), keepdims=True)
    var = jnp.square(y - mu).mean(axis=(0, 2, 3), keepdims=True)
    return g[None, :, None, None] * (y - mu) / jnp.sqrt(var + EPS) + b[None, :, None, None]


def residual_reference(x, params, *, use_1x1conv, strides):
    y = jax.nn.relu(_bn_ref(_conv_ref(x, params["w1"], params["b1"], strides, 1),
                            params["g1"], params["be1"]))
    y = _bn_ref(_conv_ref(y, params["w2"], params["b2"], 1, 1), params["g2"], params["be2"])
    if use_1x1conv:
        x = _conv_ref(x, params["w3"], params["b3"], strides, 0)
    return jax.nn.relu(y + x)


# ------------------------------- params ------------------------------------ #

def make_params(key, cin, cout, use_1x1conv):
    ks = jax.random.split(key, 8)
    p = {
        "w1": 0.1 * jax.random.normal(ks[0], (cout, cin, 3, 3), jnp.float32),
        "b1": 0.1 * jax.random.normal(ks[1], (cout,), jnp.float32),
        "w2": 0.1 * jax.random.normal(ks[2], (cout, cout, 3, 3), jnp.float32),
        "b2": 0.1 * jax.random.normal(ks[3], (cout,), jnp.float32),
        "g1": 1.0 + 0.1 * jax.random.normal(ks[4], (cout,), jnp.float32),
        "be1": 0.1 * jax.random.normal(ks[5], (cout,), jnp.float32),
        "g2": 1.0 + 0.1 * jax.random.normal(ks[6], (cout,), jnp.float32),
        "be2": 0.1 * jax.random.normal(ks[7], (cout,), jnp.float32),
    }
    if use_1x1conv:
        k3a, k3b = jax.random.split(ks[0])
        p["w3"] = 0.1 * jax.random.normal(k3a, (cout, cin, 1, 1), jnp.float32)
        p["b3"] = 0.1 * jax.random.normal(k3b, (cout,), jnp.float32)
    return p


if __name__ == "__main__":
    key = jax.random.PRNGKey(0)
    kx, kp1, kp2 = jax.random.split(key, 3)
    x = jax.random.normal(kx, (2, 4, 16, 16), jnp.float32)   # NCHW, like the PyTorch module

    # Config A: identity skip (cin == cout, stride 1). tm_target=128 -> 4 M-tiles,
    # exercising the cross-tile BN-stats accumulation path.
    pa = make_params(kp1, 4, 4, use_1x1conv=False)
    out_a = jax.block_until_ready(
        residual_forward(x, pa, use_1x1conv=False, strides=1, tm_target=128))
    ref_a = residual_reference(x, pa, use_1x1conv=False, strides=1)
    assert out_a.shape == (2, 4, 16, 16)
    assert jnp.allclose(out_a, ref_a, rtol=1e-4, atol=1e-4), "config A mismatch"

    # Config B: 1x1-conv projection skip, stride 2, channel expansion. tm_target=64
    # -> 2 M-tiles.
    pb = make_params(kp2, 4, 8, use_1x1conv=True)
    out_b = jax.block_until_ready(
        residual_forward(x, pb, use_1x1conv=True, strides=2, tm_target=64))
    ref_b = residual_reference(x, pb, use_1x1conv=True, strides=2)
    assert out_b.shape == (2, 8, 8, 8)
    assert jnp.allclose(out_b, ref_b, rtol=1e-4, atol=1e-4), "config B mismatch"

    # bf16 MXU-input path (f32 accumulation + f32 BN math); loose tolerance vs f32 ref.
    out_b16 = jax.block_until_ready(
        residual_forward(x, pb, use_1x1conv=True, strides=2,
                         compute_dtype=jnp.bfloat16, tm_target=64))
    assert jnp.allclose(out_b16, ref_b, rtol=5e-2, atol=5e-2), "bf16 path mismatch"

    print("KERNEL_OK")
</pallas_src>

<mosaic_0001>
module attributes {stable_mosaic.version = 11 : i64} {
  func.func @_conv_stats_kernel(%arg0: i32, %arg1: memref<128x36xf32, #tpu.memory_space<vmem>>, %arg2: memref<36x128xf32, #tpu.memory_space<vmem>>, %arg3: memref<1x128xf32, #tpu.memory_space<vmem>>, %arg4: memref<128x128xf32, #tpu.memory_space<vmem>>, %arg5: memref<1x128xf32, #tpu.memory_space<vmem>>, %arg6: memref<1x128xf32, #tpu.memory_space<vmem>>) attributes {dimension_semantics = [#tpu.dimension_semantics<arbitrary>], iteration_bounds = array<i64: 4>, scalar_prefetch = 0 : i64, scratch_operands = 0 : i64, tpu.core_type = #tpu.core_type<tc>, window_params = [{transform_indices = @transform_0, window_bounds = array<i64: 128, 36>}, {pipeline_mode = #tpu.pipeline_mode<synchronous>, transform_indices = @transform_1, window_bounds = array<i64: 36, 128>}, {pipeline_mode = #tpu.pipeline_mode<synchronous>, transform_indices = @transform_2, window_bounds = array<i64: 1, 128>}, {transform_indices = @transform_3, window_bounds = array<i64: 128, 128>}, {pipeline_mode = #tpu.pipeline_mode<synchronous>, transform_indices = @transform_4, window_bounds = array<i64: 1, 128>}, {pipeline_mode = #tpu.pipeline_mode<synchronous>, transform_indices = @transform_5, window_bounds = array<i64: 1, 128>}]} {
    %c0 = arith.constant 0 : index
    %c0_0 = arith.constant 0 : index
    %0 = vector.load %arg1[%c0, %c0_0] : memref<128x36xf32, #tpu.memory_space<vmem>>, vector<128x36xf32>
    %c0_1 = arith.constant 0 : index
    %c0_2 = arith.constant 0 : index
    %1 = vector.load %arg2[%c0_1, %c0_2] : memref<36x128xf32, #tpu.memory_space<vmem>>, vector<36x128xf32>
    %cst = arith.constant dense<0.000000e+00> : vector<128x128xf32>
    %2 = tpu.matmul %0, %1, %cst {dimension_numbers = #tpu.dot_dimension_numbers<[1], [0], [0], [1], [0, 0, 1, 1], [], []>} : vector<128x36xf32>, vector<36x128xf32>, vector<128x128xf32> -> vector<128x128xf32>
    %c0_3 = arith.constant 0 : index
    %c0_4 = arith.constant 0 : index
    %3 = vector.load %arg3[%c0_3, %c0_4] : memref<1x128xf32, #tpu.memory_space<vmem>>, vector<1x128xf32>
    %4 = vector.broadcast %3 : vector<1x128xf32> to vector<128x128xf32>
    %5 = arith.addf %2, %4 : vector<128x128xf32>
    %c0_5 = arith.constant 0 : index
    %c0_6 = arith.constant 0 : index
    %6 = vector.load %arg4[%c0_5, %c0_6] : memref<128x128xf32, #tpu.memory_space<vmem>>, vector<128x128xf32>
    tpu.vector_store %arg4[%c0_5, %c0_6], %5 {strides = array<i32>} : memref<128x128xf32, #tpu.memory_space<vmem>>, vector<128x128xf32>,
    %c0_i32 = arith.constant 0 : i32
    %7 = arith.cmpi eq, %arg0, %c0_i32 : i32
    %8 = arith.extui %7 : i1 to i32
    %c0_i32_7 = arith.constant 0 : i32
    %9 = arith.cmpi ne, %8, %c0_i32_7 : i32
    scf.if %9 {
      %cst_18 = arith.constant 0.000000e+00 : f32
      %21 = vector.broadcast %cst_18 : f32 to vector<1x128xf32>
      %c0_19 = arith.constant 0 : index
      %c0_20 = arith.constant 0 : index
      %22 = vector.load %arg5[%c0_19, %c0_20] : memref<1x128xf32, #tpu.memory_space<vmem>>, vector<1x128xf32>
      tpu.vector_store %arg5[%c0_19, %c0_20], %21 {strides = array<i32>} : memref<1x128xf32, #tpu.memory_space<vmem>>, vector<1x128xf32>,
      %cst_21 = arith.constant 0.000000e+00 : f32
      %23 = vector.broadcast %cst_21 : f32 to vector<1x128xf32>
      %c0_22 = arith.constant 0 : index
      %c0_23 = arith.constant 0 : index
      %24 = vector.load %arg6[%c0_22, %c0_23] : memref<1x128xf32, #tpu.memory_space<vmem>>, vector<1x128xf32>
      tpu.vector_store %arg6[%c0_22, %c0_23], %23 {strides = array<i32>} : memref<1x128xf32, #tpu.memory_space<vmem>>, vector<1x128xf32>,
    } else {
    }
    %c0_8 = arith.constant 0 : index
    %c0_9 = arith.constant 0 : index
    %10 = vector.load %arg5[%c0_8, %c0_9] : memref<1x128xf32, #tpu.memory_space<vmem>>, vector<1x128xf32>
    %cst_10 = arith.constant dense<0.000000e+00> : vector<128xf32>
    %11 = vector.multi_reduction <add>, %5, %cst_10 [0] : vector<128x128xf32> to vector<128xf32>
    %12 = vector.shape_cast %11 : vector<128xf32> to vector<1x128xf32>
    %13 = arith.addf %10, %12 : vector<1x128xf32>
    %c0_11 = arith.constant 0 : index
    %c0_12 = arith.constant 0 : index
    %14 = vector.load %arg5[%c0_11, %c0_12] : memref<1x128xf32, #tpu.memory_space<vmem>>, vector<1x128xf32>
    tpu.vector_store %arg5[%c0_11, %c0_12], %13 {strides = array<i32>} : memref<1x128xf32, #tpu.memory_space<vmem>>, vector<1x128xf32>,
    %c0_13 = arith.constant 0 : index
    %c0_14 = arith.constant 0 : index
    %15 = vector.load %arg6[%c0_13, %c0_14] : memref<1x128xf32, #tpu.memory_space<vmem>>, vector<1x128xf32>
    %16 = arith.mulf %5, %5 : vector<128x128xf32>
    %cst_15 = arith.constant dense<0.000000e+00> : vector<128xf32>
    %17 = vector.multi_reduction <add>, %16, %cst_15 [0] : vector<128x128xf32> to vector<128xf32>
    %18 = vector.shape_cast %17 : vector<128xf32> to vector<1x128xf32>
    %19 = arith.addf %15, %18 : vector<1x128xf32>
    %c0_16 = arith.constant 0 : index
    %c0_17 = arith.constant 0 : index
    %20 = vector.load %arg6[%c0_16, %c0_17] : memref<1x128xf32, #tpu.memory_space<vmem>>, vector<1x128xf32>
    tpu.vector_store %arg6[%c0_16, %c0_17], %19 {strides = array<i32>} : memref<1x128xf32, #tpu.memory_space<vmem>>, vector<1x128xf32>,
    return
  }
  func.func @transform_0(%arg0: i32) -> (i32, i32) {
    %c0_i32 = arith.constant 0 : i32
    %c0_i32_0 = arith.constant 0 : i32
    return %arg0, %c0_i32 : i32, i32
  }
  func.func @transform_1(%arg0: i32) -> (i32, i32) {
    %c0_i32 = arith.constant 0 : i32
    %c0_i32_0 = arith.constant 0 : i32
    %c0_i32_1 = arith.constant 0 : i32
    return %c0_i32, %c0_i32_0 : i32, i32
  }
  func.func @transform_2(%arg0: i32) -> (i32, i32) {
    %c0_i32 = arith.constant 0 : i32
    %c0_i32_0 = arith.constant 0 : i32
    %c0_i32_1 = arith.constant 0 : i32
    return %c0_i32, %c0_i32_0 : i32, i32
  }
  func.func @transform_3(%arg0: i32) -> (i32, i32) {
    %c0_i32 = arith.constant 0 : i32
    %c0_i32_0 = arith.constant 0 : i32
    return %arg0, %c0_i32 : i32, i32
  }
  func.func @transform_4(%arg0: i32) -> (i32, i32) {
    %c0_i32 = arith.constant 0 : i32
    %c0_i32_0 = arith.constant 0 : i32
    %c0_i32_1 = arith.constant 0 : i32
    return %c0_i32, %c0_i32_0 : i32, i32
  }
  func.func @transform_5(%arg0: i32) -> (i32, i32) {
    %c0_i32 = arith.constant 0 : i32
    %c0_i32_0 = arith.constant 0 : i32
    %c0_i32_1 = arith.constant 0 : i32
    return %c0_i32, %c0_i32_0 : i32, i32
  }
}

module attributes {stable_mosaic.version = 11 : i64} {
  func.func @_bn_relu_kernel(%arg0: i32, %arg1: memref<128x128xf32, #tpu.memory_space<vmem>>, %arg2: memref<1x128xf32, #tpu.memory_space<vmem>>, %arg3: memref<1x128xf32, #tpu.memory_space<vmem>>, %arg4: memref<128x128xf32, #tpu.memory_space<vmem>>) attributes {dimension_semantics = [#tpu.dimension_semantics<parallel>], iteration_bounds = array<i64: 4>, scalar_prefetch = 0 : i64, scratch_operands = 0 : i64, tpu.core_type = #tpu.core_type<tc>, window_params = [{transform_indices = @transform_0, window_bounds = array<i64: 128, 128>}, {pipeline_mode = #tpu.pipeline_mode<synchronous>, transform_indices = @transform_1, window_bounds = array<i64: 1, 128>}, {pipeline_mode = #tpu.pipeline_mode<synchronous>, transform_indices = @transform_2, window_bounds = array<i64: 1, 128>}, {transform_indices = @transform_3, window_bounds = array<i64: 128, 128>}]} {
    %c0 = arith.constant 0 : index
    %c0_0 = arith.constant 0 : index
    %0 = vector.load %arg1[%c0, %c0_0] : memref<128x128xf32, #tpu.memory_space<vmem>>, vector<128x128xf32>
    %c0_1 = arith.constant 0 : index
    %c0_2 = arith.constant 0 : index
    %1 = vector.load %arg2[%c0_1, %c0_2] : memref<1x128xf32, #tpu.memory_space<vmem>>, vector<1x128xf32>
    %2 = vector.broadcast %1 : vector<1x128xf32> to vector<128x128xf32>
    %3 = arith.mulf %0, %2 : vector<128x128xf32>
    %c0_3 = arith.constant 0 : index
    %c0_4 = arith.constant 0 : index
    %4 = vector.load %arg3[%c0_3, %c0_4] : memref<1x128xf32, #tpu.memory_space<vmem>>, vector<1x128xf32>
    %5 = vector.broadcast %4 : vector<1x128xf32> to vector<128x128xf32>
    %6 = arith.addf %3, %5 : vector<128x128xf32>
    %cst = arith.constant 0.000000e+00 : f32
    %7 = vector.broadcast %cst : f32 to vector<128x128xf32>
    %8 = arith.maximumf %6, %7 : vector<128x128xf32>
    %c0_5 = arith.constant 0 : index
    %c0_6 = arith.constant 0 : index
    %9 = vector.load %arg4[%c0_5, %c0_6] : memref<128x128xf32, #tpu.memory_space<vmem>>, vector<128x128xf32>
    tpu.vector_store %arg4[%c0_5, %c0_6], %8 {strides = array<i32>} : memref<128x128xf32, #tpu.memory_space<vmem>>, vector<128x128xf32>,
    return
  }
  func.func @transform_0(%arg0: i32) -> (i32, i32) {
    %c0_i32 = arith.constant 0 : i32
    %c0_i32_0 = arith.constant 0 : i32
    return %arg0, %c0_i32 : i32, i32
  }
  func.func @transform_1(%arg0: i32) -> (i32, i32) {
    %c0_i32 = arith.constant 0 : i32
    %c0_i32_0 = arith.constant 0 : i32
    %c0_i32_1 = arith.constant 0 : i32
    return %c0_i32, %c0_i32_0 : i32, i32
  }
  func.func @transform_2(%arg0: i32) -> (i32, i32) {
    %c0_i32 = arith.constant 0 : i32
    %c0_i32_0 = arith.constant 0 : i32
    %c0_i32_1 = arith.constant 0 : i32
    return %c0_i32, %c0_i32_0 : i32, i32
  }
  func.func @transform_3(%arg0: i32) -> (i32, i32) {
    %c0_i32 = arith.constant 0 : i32
    %c0_i32_0 = arith.constant 0 : i32
    return %arg0, %c0_i32 : i32, i32
  }
}

module attributes {stable_mosaic.version = 11 : i64} {
  func.func @_bn_add_relu_kernel(%arg0: i32, %arg1: memref<128x128xf32, #tpu.memory_space<vmem>>, %arg2: memref<1x128xf32, #tpu.memory_space<vmem>>, %arg3: memref<1x128xf32, #tpu.memory_space<vmem>>, %arg4: memref<128x128xf32, #tpu.memory_space<vmem>>, %arg5: memref<128x128xf32, #tpu.memory_space<vmem>>) attributes {dimension_semantics = [#tpu.dimension_semantics<parallel>], iteration_bounds = array<i64: 4>, scalar_prefetch = 0 : i64, scratch_operands = 0 : i64, tpu.core_type = #tpu.core_type<tc>, window_params = [{transform_indices = @transform_0, window_bounds = array<i64: 128, 128>}, {pipeline_mode = #tpu.pipeline_mode<synchronous>, transform_indices = @transform_1, window_bounds = array<i64: 1, 128>}, {pipeline_mode = #tpu.pipeline_mode<synchronous>, transform_indices = @transform_2, window_bounds = array<i64: 1, 128>}, {transform_indices = @transform_3, window_bounds = array<i64: 128, 128>}, {transform_indices = @transform_4, window_bounds = array<i64: 128, 128>}]} {
    %c0 = arith.constant 0 : index
    %c0_0 = arith.constant 0 : index
    %0 = vector.load %arg1[%c0, %c0_0] : memref<128x128xf32, #tpu.memory_space<vmem>>, vector<128x128xf32>
    %c0_1 = arith.constant 0 : index
    %c0_2 = arith.constant 0 : index
    %1 = vector.load %arg2[%c0_1, %c0_2] : memref<1x128xf32, #tpu.memory_space<vmem>>, vector<1x128xf32>
    %2 = vector.broadcast %1 : vector<1x128xf32> to vector<128x128xf32>
    %3 = arith.mulf %0, %2 : vector<128x128xf32>
    %c0_3 = arith.constant 0 : index
    %c0_4 = arith.constant 0 : index
    %4 = vector.load %arg3[%c0_3, %c0_4] : memref<1x128xf32, #tpu.memory_space<vmem>>, vector<1x128xf32>
    %5 = vector.broadcast %4 : vector<1x128xf32> to vector<128x128xf32>
    %6 = arith.addf %3, %5 : vector<128x128xf32>
    %c0_5 = arith.constant 0 : index
    %c0_6 = arith.constant 0 : index
    %7 = vector.load %arg4[%c0_5, %c0_6] : memref<128x128xf32, #tpu.memory_space<vmem>>, vector<128x128xf32>
    %8 = arith.addf %6, %7 : vector<128x128xf32>
    %cst = arith.constant 0.000000e+00 : f32
    %9 = vector.broadcast %cst : f32 to vector<128x128xf32>
    %10 = arith.maximumf %8, %9 : vector<128x128xf32>
    %c0_7 = arith.constant 0 : index
    %c0_8 = arith.constant 0 : index
    %11 = vector.load %arg5[%c0_7, %c0_8] : memref<128x128xf32, #tpu.memory_space<vmem>>, vector<128x128xf32>
    tpu.vector_store %arg5[%c0_7, %c0_8], %10 {strides = array<i32>} : memref<128x128xf32, #tpu.memory_space<vmem>>, vector<128x128xf32>,
    return
  }
  func.func @transform_0(%arg0: i32) -> (i32, i32) {
    %c0_i32 = arith.constant 0 : i32
    %c0_i32_0 = arith.constant 0 : i32
    return %arg0, %c0_i32 : i32, i32
  }
  func.func @transform_1(%arg0: i32) -> (i32, i32) {
    %c0_i32 = arith.constant 0 : i32
    %c0_i32_0 = arith.constant 0 : i32
    %c0_i32_1 = arith.constant 0 : i32
    return %c0_i32, %c0_i32_0 : i32, i32
  }
  func.func @transform_2(%arg0: i32) -> (i32, i32) {
    %c0_i32 = arith.constant 0 : i32
    %c0_i32_0 = arith.constant 0 : i32
    %c0_i32_1 = arith.constant 0 : i32
    return %c0_i32, %c0_i32_0 : i32, i32
  }
  func.func @transform_3(%arg0: i32) -> (i32, i32) {
    %c0_i32 = arith.constant 0 : i32
    %c0_i32_0 = arith.constant 0 : i32
    return %arg0, %c0_i32 : i32, i32
  }
  func.func @transform_4(%arg0: i32) -> (i32, i32) {
    %c0_i32 = arith.constant 0 : i32
    %c0_i32_0 = arith.constant 0 : i32
    return %arg0, %c0_i32 : i32, i32
  }
}

</mosaic_0001>

<llo_original>
// kernel: residual_forward.4
$region0: #{residual_forward.4}
  #allocation0 [shape = 'u32[]', space=smem, size = 0x4, offset = 0x4, fixed_abs, tag = 'smem constant byte address 0x4 - core index']
  #allocation1 [shape = 'u32[144,128]{1,0:T(1,128)}', space=vmem, size = 0x12000, scoped, tag = 'internal scratch']
  %s0 = inlined_call_operand.vmem [shape: f32[512,36], index: 0, kind: input, shape index: {}]
  %s1 = inlined_call_operand.vmem [shape: f32[36,128], index: 1, kind: input, shape index: {}]
  %s2 = inlined_call_operand.vmem [shape: f32[1,128], index: 2, kind: input, shape index: {}]
  %s3 = inlined_call_operand.vmem [shape: f32[512,128], index: 3, kind: output, shape index: {0}]
  %s4 = inlined_call_operand.vmem [shape: f32[1,128], index: 4, kind: output, shape index: {1}]
  %s5 = inlined_call_operand.vmem [shape: f32[1,128], index: 5, kind: output, shape index: {2}]
  %6 = xla_tuple %s3, %s4, %s5
  %s7 = sld [smem:[#allocation0]]
  $region65: #{residual_forward.4} parent=0
    _
  %s9 = ssub.s32 1, %s7
  %s10 = scalar_select 0, %s9, %s7
  loop: start=0, step=1, limit=6
  $region2: #{residual_forward.4} parent=0 // loop_pre_header
    _
  $region3: #{residual_forward.4} parent=0 // loop_header
    %s12 = sphi 0, %s16
    %p13 = scmp.ge.s32.totalorder %s12, 6
    %s22 = sphi 0, %s24
    %s25 = sphi 0, %s22
    %s26 = sphi 0, %s25
    %s42 = sphi 0, %s26
    %s46 = sphi 0, %s46
    %s48 = sphi 0, %s46
    %s49 = sphi 0, %s48
    %s63 = sphi 0, %s49
    %s67 = sphi 0, %s67
    %s69 = sphi 0, %s67
    %s70 = sphi 0, %s69
    %s84 = sphi 0, %s70
    %s90 = sphi 0, %s92
    %s93 = sphi 0, %s90
    %s94 = sphi 0, %s93
    %s110 = sphi 0, %s94
    %s114 = sphi 0, %s114
    %s116 = sphi 0, %s114
    %s117 = sphi 0, %s116
    %s131 = sphi 0, %s117
    %s135 = sphi 0, %s135
    %s137 = sphi 0, %s135
    %s138 = sphi 0, %s137
    %s152 = sphi 0, %s138
  $region4: #{residual_forward.4} parent=0 // loop_header_branch
    %15 = sbr.rel (%p13) target = $region8
  $region5: #{residual_forward.4} parent=0 // loop_body
    %s17 = ssub.s32 %s12, 1
    %s18 = ssub.s32 %s12, 2
    %s19 = sadd.s32 %s12, 1
    %s20 = ssub.s32 %s12, %s19
    %p21 = scmp.eq.s32.totalorder %s20, 0
    %s23 = sadd.s32 %s22, 1
    %s24 = scalar_select %p21, %s22, %s23
    %p27 = pneg %p21
    %p28 = scmp.eq.s32.totalorder %s12, 3
    %p29 = por %p27, %p28
    %p30 = scmp.ne.s32.totalorder %s22, %s25
    %p31 = scmp.eq.s32.totalorder %s12, 0
    %p32 = por %p30, %p31
    %p33 = scmp.ne.s32.totalorder %s22, %s25
    %p34 = scmp.eq.s32.totalorder %s17, 3
    %p35 = por %p33, %p34
    %p36 = scmp.ne.s32.totalorder %s25, %s26
    %p37 = scmp.eq.s32.totalorder %s17, 0
    %p38 = por %p36, %p37
    %p39 = scmp.ne.s32.totalorder %s25, %s26
    %p40 = scmp.eq.s32.totalorder %s18, 3
    %p41 = por %p39, %p40
    %p43 = scmp.ne.s32.totalorder %s26, %s42
    %p44 = scmp.eq.s32.totalorder %s18, 0
    %p45 = por %p43, %p44
    %s47 = sadd.s32 %s46, 1
    %p50 = scmp.eq.s32.totalorder %s12, 3
    %p51 = scmp.ne.s32.totalorder %s46, %s48
    %p52 = scmp.eq.s32.totalorder %s12, 0
    %p53 = por %p51, %p52
    %p54 = scmp.ne.s32.totalorder %s46, %s48
    %p55 = scmp.eq.s32.totalorder %s17, 3
    %p56 = por %p54, %p55
    %p57 = scmp.ne.s32.totalorder %s48, %s49
    %p58 = scmp.eq.s32.totalorder %s17, 0
    %p59 = por %p57, %p58
    %p60 = scmp.ne.s32.totalorder %s48, %s49
    %p61 = scmp.eq.s32.totalorder %s18, 3
    %p62 = por %p60, %p61
    %p64 = scmp.ne.s32.totalorder %s49, %s63
    %p65 = scmp.eq.s32.totalorder %s18, 0
    %p66 = por %p64, %p65
    %s68 = sadd.s32 %s67, 1
    %p71 = scmp.eq.s32.totalorder %s12, 3
    %p72 = scmp.ne.s32.totalorder %s67, %s69
    %p73 = scmp.eq.s32.totalorder %s12, 0
    %p74 = por %p72, %p73
    %p75 = scmp.ne.s32.totalorder %s67, %s69
    %p76 = scmp.eq.s32.totalorder %s17, 3
    %p77 = por %p75, %p76
    %p78 = scmp.ne.s32.totalorder %s69, %s70
    %p79 = scmp.eq.s32.totalorder %s17, 0
    %p80 = por %p78, %p79
    %p81 = scmp.ne.s32.totalorder %s69, %s70
    %p82 = scmp.eq.s32.totalorder %s18, 3
    %p83 = por %p81, %p82
    %p85 = scmp.ne.s32.totalorder %s70, %s84
    %p86 = scmp.eq.s32.totalorder %s18, 0
    %p87 = por %p85, %p86
    %s88 = ssub.s32 %s12, %s19
    %p89 = scmp.eq.s32.totalorder %s88, 0
    %s91 = sadd.s32 %s90, 1
    %s92 = scalar_select %p89, %s90, %s91
    %p95 = pneg %p89
    %p96 = scmp.eq.s32.totalorder %s12, 3
    %p97 = por %p95, %p96
    %p98 = scmp.ne.s32.totalorder %s90, %s93
    %p99 = scmp.eq.s32.totalorder %s12, 0
    %p100 = por %p98, %p99
    %p101 = scmp.ne.s32.totalorder %s90, %s93
    %p102 = scmp.eq.s32.totalorder %s17, 3
    %p103 = por %p101, %p102
    %p104 = scmp.ne.s32.totalorder %s93, %s94
    %p105 = scmp.eq.s32.totalorder %s17, 0
    %p106 = por %p104, %p105
    %p107 = scmp.ne.s32.totalorder %s93, %s94
    %p108 = scmp.eq.s32.totalorder %s18, 3
    %p109 = por %p107, %p108
    %p111 = scmp.ne.s32.totalorder %s94, %s110
    %p112 = scmp.eq.s32.totalorder %s18, 0
    %p113 = por %p111, %p112
    %s115 = sadd.s32 %s114, 1
    %p118 = scmp.eq.s32.totalorder %s12, 3
    %p119 = scmp.ne.s32.totalorder %s114, %s116
    %p120 = scmp.eq.s32.totalorder %s12, 0
    %p121 = por %p119, %p120
    %p122 = scmp.ne.s32.totalorder %s114, %s116
    %p123 = scmp.eq.s32.totalorder %s17, 3
    %p124 = por %p122, %p123
    %p125 = scmp.ne.s32.totalorder %s116, %s117
    %p126 = scmp.eq.s32.totalorder %s17, 0
    %p127 = por %p125, %p126
    %p128 = scmp.ne.s32.totalorder %s116, %s117
    %p129 = scmp.eq.s32.totalorder %s18, 3
    %p130 = por %p128, %p129
    %p132 = scmp.ne.s32.totalorder %s117, %s131
    %p133 = scmp.eq.s32.totalorder %s18, 0
    %p134 = por %p132, %p133
    %s136 = sadd.s32 %s135, 1
    %p139 = scmp.eq.s32.totalorder %s12, 3
    %p140 = scmp.ne.s32.totalorder %s135, %s137
    %p141 = scmp.eq.s32.totalorder %s12, 0
    %p142 = por %p140, %p141
    %p143 = scmp.ne.s32.totalorder %s135, %s137
    %p144 = scmp.eq.s32.totalorder %s17, 3
    %p145 = por %p143, %p144
    %p146 = scmp.ne.s32.totalorder %s137, %s138
    %p147 = scmp.eq.s32.totalorder %s17, 0
    %p148 = por %p146, %p147
    %p149 = scmp.ne.s32.totalorder %s137, %s138
    %p150 = scmp.eq.s32.totalorder %s18, 3
    %p151 = por %p149, %p150
    %p153 = scmp.ne.s32.totalorder %s138, %s152
    %p154 = scmp.eq.s32.totalorder %s18, 0
    %p155 = por %p153, %p154
    %p156 = scmp.le.s32.totalorder 1, %s12
    %p157 = scmp.lt.s32.totalorder %s12, 5
    %p158 = pnand %p156, %p157
    %p159 = pneg %p158
    // Predicated region
    $region9: #{residual_forward.4} parent=5 // pred_check
      _
    $region10: #{residual_forward.4} parent=5 // pred_check_branch
      %161 = sbr.rel (%p158) target = $region12
    $region11: #{residual_forward.4} parent=5 // pred_region
      %s162 = ssub.s32 %s12, 1
      // Predicated region
      $region13: #{residual_forward.4} parent=11 // pred_check
        %p163 = pneg %p59
      $region14: #{residual_forward.4} parent=11 // pred_check_branch
        %165 = sbr.rel (%p163) target = $region16
      $region15: #{residual_forward.4} parent=11 // pred_region
        _
      $region16: #{residual_forward.4} parent=11 // pred_fallthru
        _
      // Predicated region
      $region17: #{residual_forward.4} parent=11 // pred_check
        %p166 = pneg %p80
      $region18: #{residual_forward.4} parent=11 // pred_check_branch
        %168 = sbr.rel (%p166) target = $region20
      $region19: #{residual_forward.4} parent=11 // pred_region
        _
      $region20: #{residual_forward.4} parent=11 // pred_fallthru
        _
    $region12: #{residual_forward.4} parent=5 // pred_fallthru
      _
    %p169 = scmp.lt.s32.totalorder %s12, 4
    // Predicated region
    $region21: #{residual_forward.4} parent=5 // pred_check
      %p170 = pneg %p169
    $region22: #{residual_forward.4} parent=5 // pred_check_branch
      %172 = sbr.rel (%p170) target = $region24
    $region23: #{residual_forward.4} parent=5 // pred_region
      // Predicated region
      $region25: #{residual_forward.4} parent=23 // pred_check
        %p173 = pneg %p32
      $region26: #{residual_forward.4} parent=23 // pred_check_branch
        %175 = sbr.rel (%p173) target = $region28
      $region27: #{residual_forward.4} parent=23 // pred_region
        %s176 = smul.u32 16, %s12
        %p177 = scmp.lt.s32.totalorder %s176, 63
        %s178 = scalar_select %p177, %s176, 63
        %s179 = smul.addr %s178, 8
        %s180 = scalar_lea.vmem %s0, %s179
        %s181 = smul.u32 16, %s12
      $region28: #{residual_forward.4} parent=23 // pred_fallthru
        _
    $region24: #{residual_forward.4} parent=5 // pred_fallthru
      _
    %p182 = scmp.le.s32.totalorder 1, %s12
    %p183 = scmp.lt.s32.totalorder %s12, 5
    %p184 = pnand %p182, %p183
    %p185 = pneg %p184
    // Predicated region
    $region29: #{residual_forward.4} parent=5 // pred_check
      _
    $region30: #{residual_forward.4} parent=5 // pred_check_branch
      %187 = sbr.rel (%p184) target = $region32
    $region31: #{residual_forward.4} parent=5 // pred_region
      %s188 = ssub.s32 %s12, 1
      %s189 = smul.u32 16, %s17
      %p190 = scmp.lt.s32.totalorder %s189, 63
      %s191 = scalar_select %p190, %s189, 63
      %s192 = smul.addr %s191, 8
      %s193 = scalar_lea.vmem %s0, %s192
      %p194 = pneg %p38
      %p195 = pneg %p35
      %p196 = pneg %p59
      %p197 = pneg %p56
      %p198 = pneg %p80
      %p199 = pneg %p77
      %p200 = pneg %p106
      %p201 = pneg %p103
      %s202 = smul.u32 16, %s17
      %p203 = scmp.lt.s32.totalorder %s202, 63
      %s204 = scalar_select %p203, %s202, 63
      %s205 = smul.addr %s204, 8
      %s206 = scalar_lea.vmem %s3, %s205
      %p207 = pneg %p127
      %p208 = pneg %p124
      %p209 = pneg %p148
      %p210 = pneg %p145
      %s211 = smul.u32 16, %s17
      %p212 = scmp.lt.s32.totalorder %s211, 63
      %s213 = scalar_select %p212, %s211, 63
      %s214 = smul.addr %s213, 8
      %s215 = scalar_lea.vmem %s0, %s214
      %s216 = smul.u32 16, %s17
      %s217 = smul.u32 16, %s17
      %p218 = scmp.lt.s32.totalorder %s217, 63
      %s219 = scalar_select %p218, %s217, 63
      %s220 = smul.addr %s219, 8
      %s221 = scalar_lea.vmem %s3, %s220
      %s222 = smul.u32 16, %s17
      %v223 = vld [vmem:[%s215] sm:$0xff]
      %v224 = vld [vmem:[%s215 + $0x8] sm:$0xff]
      %v225 = vld [vmem:[%s215 + $0x10] sm:$0xff]
      %v226 = vld [vmem:[%s215 + $0x18] sm:$0xff]
      %v227 = vld [vmem:[%s215 + $0x20] sm:$0xff]
      %v228 = vld [vmem:[%s215 + $0x28] sm:$0xff]
      %v229 = vld [vmem:[%s215 + $0x30] sm:$0xff]
      %v230 = vld [vmem:[%s215 + $0x38] sm:$0xff]
      %v231 = vld [vmem:[%s215 + $0x40] sm:$0xff]
      %v232 = vld [vmem:[%s215 + $0x48] sm:$0xff]
      %v233 = vld [vmem:[%s215 + $0x50] sm:$0xff]
      %v234 = vld [vmem:[%s215 + $0x58] sm:$0xff]
      %v235 = vld [vmem:[%s215 + $0x60] sm:$0xff]
      %v236 = vld [vmem:[%s215 + $0x68] sm:$0xff]
      %v237 = vld [vmem:[%s215 + $0x70] sm:$0xff]
      %v238 = vld [vmem:[%s215 + $0x78] sm:$0xff]
      %v239 = vld [vmem:[%s1] sm:$0xff]
      %v240 = vld [vmem:[%s1 + $0x8] sm:$0xff]
      %v241 = vld [vmem:[%s1 + $0x10] sm:$0xff]
      %v242 = vld [vmem:[%s1 + $0x18] sm:$0xff]
      %v243 = vld [vmem:[%s1 + $0x20] sm:$0xf]
      %v244 = vld [vmem:[%s2] sm:$0x1]
      %v246 = vlaneseq
      %v247 = vshrl.u32 %v246, 7
      %v248 = vsub.s32 0, %v247
      %v249 = vrot.slane %v244, %v248
      %vm251 = vcmask 293888
      %v253 = vsel %vm251, %v223, 0
      %v256 = vsel %vm251, %v224, 0
      %v259 = vsel %vm251, %v225, 0
      %v262 = vsel %vm251, %v226, 0
      %v265 = vsel %vm251, %v227, 0
      %v268 = vsel %vm251, %v228, 0
      %v271 = vsel %vm251, %v229, 0
      %v274 = vsel %vm251, %v230, 0
      %v277 = vsel %vm251, %v231, 0
      %v280 = vsel %vm251, %v232, 0
      %v283 = vsel %vm251, %v233, 0
      %v286 = vsel %vm251, %v234, 0
      %v289 = vsel %vm251, %v235, 0
      %v292 = vsel %vm251, %v236, 0
      %v295 = vsel %vm251, %v237, 0
      %v298 = vsel %vm251, %v238, 0
      %vm300 = vcmask 1043456
      %v302 = vsel %vm300, %v243, 0
      %304 = vmatprep.subr.mxu0 0.0
      %305 = vmatpush1.msra.mxu0 %v239
      %306 = vmatprep.subr.mxu0 0.0
      %307 = vmatpush1.msra.mxu0 %v240
      %308 = vmatprep.subr.mxu0 0.0
      %309 = vmatpush1.msra.mxu0 %v241
      %310 = vmatprep.subr.mxu0 0.0
      %311 = vmatpush1.msra.mxu0 %v242
      %312 = vmatprep.subr.mxu0 0.0
      %313 = vmatpush1.msra.mxu0 %v302
      %314 = vmatprep.subr.mxu0 0.0
      %315 = vmatpush1.msra.mxu0 0.0
      %316 = vmatprep.subr.mxu0 0.0
      %317 = vmatpush1.msra.mxu0 0.0
      %318 = vmatprep.subr.mxu0 0.0
      %319 = vmatpush1.msra.mxu0 0.0
      %320 = vmatprep.subr.mxu0 0.0
      %321 = vmatpush1.msra.mxu0 0.0
      %322 = vmatprep.subr.mxu0 0.0
      %323 = vmatpush1.msra.mxu0 0.0
      %324 = vmatprep.subr.mxu0 0.0
      %325 = vmatpush1.msra.mxu0 0.0
      %326 = vmatprep.subr.mxu0 0.0
      %327 = vmatpush1.msra.mxu0 0.0
      %328 = vmatprep.subr.mxu0 0.0
      %329 = vmatpush1.msra.mxu0 0.0
      %330 = vmatprep.subr.mxu0 0.0
      %331 = vmatpush1.msra.mxu0 0.0
      %332 = vmatprep.subr.mxu0 0.0
      %333 = vmatpush1.msra.mxu0 0.0
      %334 = vmatprep.subr.mxu0 0.0
      %335 = vmatpush1.msra.mxu0 0.0
      %336 = vmatprep.subr.mxu0 0.0
      %337 = vmatpush1.msra.mxu0 0.0
      %338 = vmatprep.subr.mxu0 0.0
      %339 = vmatpush1.msra.mxu0 0.0
      %340 = vmatprep.subr.mxu0 0.0
      %341 = vmatpush1.msra.mxu0 0.0
      %342 = vmatprep.subr.mxu0 0.0
      %343 = vmatpush1.msra.mxu0 0.0
      %344 = vmatprep.subr.mxu0 0.0
      %345 = vmatpush1.msra.mxu0 0.0
      %346 = vmatprep.subr.mxu0 0.0
      %347 = vmatpush1.msra.mxu0 0.0
      %348 = vmatprep.subr.mxu0 0.0
      %349 = vmatpush1.msra.mxu0 0.0
      %350 = vmatprep.subr.mxu0 0.0
      %351 = vmatpush1.msra.mxu0 0.0
      %352 = vmatprep.subr.mxu0 0.0
      %353 = vmatpush1.msra.mxu0 0.0
      %354 = vmatprep.subr.mxu0 0.0
      %355 = vmatpush1.msra.mxu0 0.0
      %356 = vmatprep.subr.mxu0 0.0
      %357 = vmatpush1.msra.mxu0 0.0
      %358 = vmatprep.subr.mxu0 0.0
      %359 = vmatpush1.msra.mxu0 0.0
      %360 = vmatprep.subr.mxu0 0.0
      %361 = vmatpush1.msra.mxu0 0.0
      %362 = vmatprep.subr.mxu0 0.0
      %363 = vmatpush1.msra.mxu0 0.0
      %364 = vmatprep.subr.mxu0 0.0
      %365 = vmatpush1.msra.mxu0 0.0
      %366 = vmatprep.subr.mxu0 0.0
      %367 = vmatpush1.msra.mxu0 0.0
      %368 = vmatprep.mubr.f32.mxu0 0.0
      %369 = vmatmul.mubr.f32.gmra.mrb[0].mxu0 %v253
      %v370 = vpop.f32.mrb[0].mxu0
      %v371 = vadd.f32 %v249, %v370
      %v372 = vpop.f32.mrb[0].mxu0
      %373 = vmatprep.mubr.f32.mxu0 0.0
      %374 = vmatmul.mubr.f32.gmra.mrb[0].mxu0 %v256
      %v375 = vpop.f32.mrb[0].mxu0
      %v376 = vadd.f32 %v249, %v375
      %v377 = vpop.f32.mrb[0].mxu0
      %378 = vmatprep.mubr.f32.mxu0 0.0
      %379 = vmatmul.mubr.f32.gmra.mrb[0].mxu0 %v259
      %v380 = vpop.f32.mrb[0].mxu0
      %v381 = vadd.f32 %v249, %v380
      %v382 = vpop.f32.mrb[0].mxu0
      %383 = vmatprep.mubr.f32.mxu0 0.0
      %384 = vmatmul.mubr.f32.gmra.mrb[0].mxu0 %v262
      %v385 = vpop.f32.mrb[0].mxu0
      %v386 = vadd.f32 %v249, %v385
      %v387 = vpop.f32.mrb[0].mxu0
      %388 = vmatprep.mubr.f32.mxu0 0.0
      %389 = vmatmul.mubr.f32.gmra.mrb[0].mxu0 %v265
      %v390 = vpop.f32.mrb[0].mxu0
      %v391 = vadd.f32 %v249, %v390
      %v392 = vpop.f32.mrb[0].mxu0
      %393 = vmatprep.mubr.f32.mxu0 0.0
      %394 = vmatmul.mubr.f32.gmra.mrb[0].mxu0 %v268
      %v395 = vpop.f32.mrb[0].mxu0
      %v396 = vadd.f32 %v249, %v395
      %v397 = vpop.f32.mrb[0].mxu0
      %398 = vmatprep.mubr.f32.mxu0 0.0
      %399 = vmatmul.mubr.f32.gmra.mrb[0].mxu0 %v271
      %v400 = vpop.f32.mrb[0].mxu0
      %v401 = vadd.f32 %v249, %v400
      %v402 = vpop.f32.mrb[0].mxu0
      %403 = vmatprep.mubr.f32.mxu0 0.0
      %404 = vmatmul.mubr.f32.gmra.mrb[0].mxu0 %v274
      %v405 = vpop.f32.mrb[0].mxu0
      %v406 = vadd.f32 %v249, %v405
      %v407 = vpop.f32.mrb[0].mxu0
      %408 = vmatprep.mubr.f32.mxu0 0.0
      %409 = vmatmul.mubr.f32.gmra.mrb[0].mxu0 %v277
      %v410 = vpop.f32.mrb[0].mxu0
      %v411 = vadd.f32 %v249, %v410
      %v412 = vpop.f32.mrb[0].mxu0
      %413 = vmatprep.mubr.f32.mxu0 0.0
      %414 = vmatmul.mubr.f32.gmra.mrb[0].mxu0 %v280
      %v415 = vpop.f32.mrb[0].mxu0
      %v416 = vadd.f32 %v249, %v415
      %v417 = vpop.f32.mrb[0].mxu0
      %418 = vmatprep.mubr.f32.mxu0 0.0
      %419 = vmatmul.mubr.f32.gmra.mrb[0].mxu0 %v283
      %v420 = vpop.f32.mrb[0].mxu0
      %v421 = vadd.f32 %v249, %v420
      %v422 = vpop.f32.mrb[0].mxu0
      %423 = vmatprep.mubr.f32.mxu0 0.0
      %424 = vmatmul.mubr.f32.gmra.mrb[0].mxu0 %v286
      %v425 = vpop.f32.mrb[0].mxu0
      %v426 = vadd.f32 %v249, %v425
      %v427 = vpop.f32.mrb[0].mxu0
      %428 = vmatprep.mubr.f32.mxu0 0.0
      %429 = vmatmul.mubr.f32.gmra.mrb[0].mxu0 %v289
      %v430 = vpop.f32.mrb[0].mxu0
      %v431 = vadd.f32 %v249, %v430
      %v432 = vpop.f32.mrb[0].mxu0
      %433 = vmatprep.mubr.f32.mxu0 0.0
      %434 = vmatmul.mubr.f32.gmra.mrb[0].mxu0 %v292
      %v435 = vpop.f32.mrb[0].mxu0
      %v436 = vadd.f32 %v249, %v435
      %v437 = vpop.f32.mrb[0].mxu0
      %438 = vmatprep.mubr.f32.mxu0 0.0
      %439 = vmatmul.mubr.f32.gmra.mrb[0].mxu0 %v295
      %v440 = vpop.f32.mrb[0].mxu0
      %v441 = vadd.f32 %v249, %v440
      %v442 = vpop.f32.mrb[0].mxu0
      %443 = vmatprep.mubr.f32.mxu0 0.0
      %444 = vmatmul.mubr.f32.gmra.mrb[0].mxu0 %v298
      %v445 = vpop.f32.mrb[0].mxu0
      %v446 = vadd.f32 %v249, %v445
      %v447 = vpop.f32.mrb[0].mxu0
      %448 = vdwg.mxu0
      %449 = vst [vmem:[%s221] sm:$0xff] %v371
      %450 = vst [vmem:[%s221 + $0x8] sm:$0xff] %v376
      %451 = vst [vmem:[%s221 + $0x10] sm:$0xff] %v381
      %452 = vst [vmem:[%s221 + $0x18] sm:$0xff] %v386
      %453 = vst [vmem:[%s221 + $0x20] sm:$0xff] %v391
      %454 = vst [vmem:[%s221 + $0x28] sm:$0xff] %v396
      %455 = vst [vmem:[%s221 + $0x30] sm:$0xff] %v401
      %456 = vst [vmem:[%s221 + $0x38] sm:$0xff] %v406
      %457 = vst [vmem:[%s221 + $0x40] sm:$0xff] %v411
      %458 = vst [vmem:[%s221 + $0x48] sm:$0xff] %v416
      %459 = vst [vmem:[%s221 + $0x50] sm:$0xff] %v421
      %460 = vst [vmem:[%s221 + $0x58] sm:$0xff] %v426
      %461 = vst [vmem:[%s221 + $0x60] sm:$0xff] %v431
      %462 = vst [vmem:[%s221 + $0x68] sm:$0xff] %v436
      %463 = vst [vmem:[%s221 + $0x70] sm:$0xff] %v441
      %464 = vst [vmem:[%s221 + $0x78] sm:$0xff] %v446
      %p465 = scmp.eq.s32.totalorder %s17, 0
      // Predicated region
      $region33: #{residual_forward.4} parent=31 // pred_check
        %p466 = pneg %p465
      $region34: #{residual_forward.4} parent=31 // pred_check_branch
        %468 = sbr.rel (%p466) target = $region36
      $region35: #{residual_forward.4} parent=31 // pred_region
        %469 = vst [vmem:[%s4] sm:$0x1] 0.0
        %470 = vst [vmem:[%s5] sm:$0x1] 0.0
      $region36: #{residual_forward.4} parent=31 // pred_fallthru
        _
      %v471 = vld [vmem:[%s4] sm:$0x1]
      %v472 = vadd.f32 %v371, %v376
      %v473 = vadd.f32 %v472, %v381
      %v474 = vadd.f32 %v473, %v386
      %v475 = vadd.f32 %v474, %v391
      %v476 = vadd.f32 %v475, %v396
      %v477 = vadd.f32 %v476, %v401
      %v478 = vadd.f32 %v477, %v406
      %v479 = vadd.f32 %v478, %v411
      %v480 = vadd.f32 %v479, %v416
      %v481 = vadd.f32 %v480, %v421
      %v482 = vadd.f32 %v481, %v426
      %v483 = vadd.f32 %v482, %v431
      %v484 = vadd.f32 %v483, %v436
      %v485 = vadd.f32 %v484, %v441
      %v486 = vadd.f32 %v485, %v446
      %v487 = vrot.slane %v486, 4
      %v488 = vadd.f32 %v486, %v487
      %v489 = vrot.slane %v488, 2
      %v490 = vadd.f32 %v488, %v489
      %v491 = vrot.slane %v490, 1
      %v492 = vadd.f32 %v490, %v491
      %v493 = vadd.f32 %v471, %v492
      %494 = vst [vmem:[%s4] sm:$0x1] %v493
      %v495 = vld [vmem:[%s5] sm:$0x1]
      %v496 = vmul.f32 %v371, %v371
      %v497 = vmul.f32 %v376, %v376
      %v498 = vmul.f32 %v381, %v381
      %v499 = vmul.f32 %v386, %v386
      %v500 = vmul.f32 %v391, %v391
      %v501 = vmul.f32 %v396, %v396
      %v502 = vmul.f32 %v401, %v401
      %v503 = vmul.f32 %v406, %v406
      %v504 = vmul.f32 %v411, %v411
      %v505 = vmul.f32 %v416, %v416
      %v506 = vmul.f32 %v421, %v421
      %v507 = vmul.f32 %v426, %v426
      %v508 = vmul.f32 %v431, %v431
      %v509 = vmul.f32 %v436, %v436
      %v510 = vmul.f32 %v441, %v441
      %v511 = vmul.f32 %v446, %v446
      %v512 = vadd.f32 %v496, %v497
      %v513 = vadd.f32 %v512, %v498
      %v514 = vadd.f32 %v513, %v499
      %v515 = vadd.f32 %v514, %v500
      %v516 = vadd.f32 %v515, %v501
      %v517 = vadd.f32 %v516, %v502
      %v518 = vadd.f32 %v517, %v503
      %v519 = vadd.f32 %v518, %v504
      %v520 = vadd.f32 %v519, %v505
      %v521 = vadd.f32 %v520, %v506
      %v522 = vadd.f32 %v521, %v507
      %v523 = vadd.f32 %v522, %v508
      %v524 = vadd.f32 %v523, %v509
      %v525 = vadd.f32 %v524, %v510
      %v526 = vadd.f32 %v525, %v511
      %v527 = vrot.slane %v526, 4
      %v528 = vadd.f32 %v526, %v527
      %v529 = vrot.slane %v528, 2
      %v530 = vadd.f32 %v528, %v529
      %v531 = vrot.slane %v530, 1
      %v532 = vadd.f32 %v530, %v531
      %v533 = vadd.f32 %v495, %v532
      %534 = vst [vmem:[%s5] sm:$0x1] %v533
      %s535 = smul.u32 16, %s17
      %p536 = scmp.lt.s32.totalorder %s535, 63
      %s537 = scalar_select %p536, %s535, 63
      %s538 = smul.addr %s537, 8
      %s539 = scalar_lea.vmem %s3, %s538
      // Predicated region
      $region37: #{residual_forward.4} parent=31 // pred_check
        %p540 = pneg %p103
      $region38: #{residual_forward.4} parent=31 // pred_check_branch
        %542 = sbr.rel (%p540) target = $region40
      $region39: #{residual_forward.4} parent=31 // pred_region
        %s543 = smul.u32 16, %s17
      $region40: #{residual_forward.4} parent=31 // pred_fallthru
        _
      // Predicated region
      $region41: #{residual_forward.4} parent=31 // pred_check
        %p544 = pneg %p124
      $region42: #{residual_forward.4} parent=31 // pred_check_branch
        %546 = sbr.rel (%p544) target = $region44
      $region43: #{residual_forward.4} parent=31 // pred_region
        _
      $region44: #{residual_forward.4} parent=31 // pred_fallthru
        _
      // Predicated region
      $region45: #{residual_forward.4} parent=31 // pred_check
        %p547 = pneg %p145
      $region46: #{residual_forward.4} parent=31 // pred_check_branch
        %549 = sbr.rel (%p547) target = $region48
      $region47: #{residual_forward.4} parent=31 // pred_region
        _
      $region48: #{residual_forward.4} parent=31 // pred_fallthru
        _
      // Predicated region
      $region49: #{residual_forward.4} parent=31 // pred_check
        %p550 = pneg %p124
      $region50: #{residual_forward.4} parent=31 // pred_check_branch
        %552 = sbr.rel (%p550) target = $region52
      $region51: #{residual_forward.4} parent=31 // pred_region
        _
      $region52: #{residual_forward.4} parent=31 // pred_fallthru
        _
      // Predicated region
      $region53: #{residual_forward.4} parent=31 // pred_check
        %p553 = pneg %p145
      $region54: #{residual_forward.4} parent=31 // pred_check_branch
        %555 = sbr.rel (%p553) target = $region56
      $region55: #{residual_forward.4} parent=31 // pred_region
        _
      $region56: #{residual_forward.4} parent=31 // pred_fallthru
        _
    $region32: #{residual_forward.4} parent=5 // pred_fallthru
      _
    %p556 = scmp.le.s32.totalorder 2, %s12
    // Predicated region
    $region57: #{residual_forward.4} parent=5 // pred_check
      %p557 = pneg %p556
    $region58: #{residual_forward.4} parent=5 // pred_check_branch
      %559 = sbr.rel (%p557) target = $region60
    $region59: #{residual_forward.4} parent=5 // pred_region
      %s560 = ssub.s32 %s12, 2
      // Predicated region
      $region61: #{residual_forward.4} parent=59 // pred_check
        %p561 = pneg %p109
      $region62: #{residual_forward.4} parent=59 // pred_check_branch
        %563 = sbr.rel (%p561) target = $region64
      $region63: #{residual_forward.4} parent=59 // pred_region
        %s564 = smul.u32 16, %s18
        %p565 = scmp.lt.s32.totalorder %s564, 63
        %s566 = scalar_select %p565, %s564, 63
        %s567 = smul.addr %s566, 8
        %s568 = scalar_lea.vmem %s3, %s567
      $region64: #{residual_forward.4} parent=59 // pred_fallthru
        _
    $region60: #{residual_forward.4} parent=5 // pred_fallthru
      _
  $region6: #{residual_forward.4} parent=0 // loop_footer
    %s16 = sadd.s32 1, %s12
  $region7: #{residual_forward.4} parent=0 // loop_footer_branch
    %11 = sbr.rel target = $region3
  $region8: #{residual_forward.4} parent=0 // loop_exit
    _

// kernel: residual_forward.5
$region0: #{residual_forward.5}
  #allocation0 [shape = 'u32[]', space=smem, size = 0x4, offset = 0x4, fixed_abs, tag = 'smem constant byte address 0x4 - core index']
  #allocation1 [shape = 'u32[144,128]{1,0:T(1,128)}', space=vmem, size = 0x12000, scoped, tag = 'internal scratch']
  %s0 = inlined_call_operand.vmem [shape: f32[512,128], index: 0, kind: input, shape index: {}]
  %s1 = inlined_call_operand.vmem [shape: f32[1,128], index: 1, kind: input, shape index: {}]
  %s2 = inlined_call_operand.vmem [shape: f32[1,128], index: 2, kind: input, shape index: {}]
  %s3 = inlined_call_operand.vmem [shape: f32[512,128], index: 3, kind: output, shape index: {}]
  %s4 = sld [smem:[#allocation0]]
  $region45: #{residual_forward.5} parent=0
    _
  %s6 = ssub.s32 1, %s4
  %s7 = scalar_select 0, %s6, %s4
  loop: start=0, step=1, limit=6
  $region2: #{residual_forward.5} parent=0 // loop_pre_header
    _
  $region3: #{residual_forward.5} parent=0 // loop_header
    %s9 = sphi 0, %s13
    %p10 = scmp.ge.s32.totalorder %s9, 6
    %s19 = sphi 0, %s21
    %s22 = sphi 0, %s19
    %s23 = sphi 0, %s22
    %s39 = sphi 0, %s23
    %s43 = sphi 0, %s43
    %s45 = sphi 0, %s43
    %s46 = sphi 0, %s45
    %s60 = sphi 0, %s46
    %s64 = sphi 0, %s64
    %s66 = sphi 0, %s64
    %s67 = sphi 0, %s66
    %s81 = sphi 0, %s67
    %s87 = sphi 0, %s89
    %s90 = sphi 0, %s87
    %s91 = sphi 0, %s90
    %s107 = sphi 0, %s91
  $region4: #{residual_forward.5} parent=0 // loop_header_branch
    %12 = sbr.rel (%p10) target = $region8
  $region5: #{residual_forward.5} parent=0 // loop_body
    %s14 = ssub.s32 %s9, 1
    %s15 = ssub.s32 %s9, 2
    %s16 = sadd.s32 %s9, 1
    %s17 = ssub.s32 %s9, %s16
    %p18 = scmp.eq.s32.totalorder %s17, 0
    %s20 = sadd.s32 %s19, 1
    %s21 = scalar_select %p18, %s19, %s20
    %p24 = pneg %p18
    %p25 = scmp.eq.s32.totalorder %s9, 3
    %p26 = por %p24, %p25
    %p27 = scmp.ne.s32.totalorder %s19, %s22
    %p28 = scmp.eq.s32.totalorder %s9, 0
    %p29 = por %p27, %p28
    %p30 = scmp.ne.s32.totalorder %s19, %s22
    %p31 = scmp.eq.s32.totalorder %s14, 3
    %p32 = por %p30, %p31
    %p33 = scmp.ne.s32.totalorder %s22, %s23
    %p34 = scmp.eq.s32.totalorder %s14, 0
    %p35 = por %p33, %p34
    %p36 = scmp.ne.s32.totalorder %s22, %s23
    %p37 = scmp.eq.s32.totalorder %s15, 3
    %p38 = por %p36, %p37
    %p40 = scmp.ne.s32.totalorder %s23, %s39
    %p41 = scmp.eq.s32.totalorder %s15, 0
    %p42 = por %p40, %p41
    %s44 = sadd.s32 %s43, 1
    %p47 = scmp.eq.s32.totalorder %s9, 3
    %p48 = scmp.ne.s32.totalorder %s43, %s45
    %p49 = scmp.eq.s32.totalorder %s9, 0
    %p50 = por %p48, %p49
    %p51 = scmp.ne.s32.totalorder %s43, %s45
    %p52 = scmp.eq.s32.totalorder %s14, 3
    %p53 = por %p51, %p52
    %p54 = scmp.ne.s32.totalorder %s45, %s46
    %p55 = scmp.eq.s32.totalorder %s14, 0
    %p56 = por %p54, %p55
    %p57 = scmp.ne.s32.totalorder %s45, %s46
    %p58 = scmp.eq.s32.totalorder %s15, 3
    %p59 = por %p57, %p58
    %p61 = scmp.ne.s32.totalorder %s46, %s60
    %p62 = scmp.eq.s32.totalorder %s15, 0
    %p63 = por %p61, %p62
    %s65 = sadd.s32 %s64, 1
    %p68 = scmp.eq.s32.totalorder %s9, 3
    %p69 = scmp.ne.s32.totalorder %s64, %s66
    %p70 = scmp.eq.s32.totalorder %s9, 0
    %p71 = por %p69, %p70
    %p72 = scmp.ne.s32.totalorder %s64, %s66
    %p73 = scmp.eq.s32.totalorder %s14, 3
    %p74 = por %p72, %p73
    %p75 = scmp.ne.s32.totalorder %s66, %s67
    %p76 = scmp.eq.s32.totalorder %s14, 0
    %p77 = por %p75, %p76
    %p78 = scmp.ne.s32.totalorder %s66, %s67
    %p79 = scmp.eq.s32.totalorder %s15, 3
    %p80 = por %p78, %p79
    %p82 = scmp.ne.s32.totalorder %s67, %s81
    %p83 = scmp.eq.s32.totalorder %s15, 0
    %p84 = por %p82, %p83
    %s85 = ssub.s32 %s9, %s16
    %p86 = scmp.eq.s32.totalorder %s85, 0
    %s88 = sadd.s32 %s87, 1
    %s89 = scalar_select %p86, %s87, %s88
    %p92 = pneg %p86
    %p93 = scmp.eq.s32.totalorder %s9, 3
    %p94 = por %p92, %p93
    %p95 = scmp.ne.s32.totalorder %s87, %s90
    %p96 = scmp.eq.s32.totalorder %s9, 0
    %p97 = por %p95, %p96
    %p98 = scmp.ne.s32.totalorder %s87, %s90
    %p99 = scmp.eq.s32.totalorder %s14, 3
    %p100 = por %p98, %p99
    %p101 = scmp.ne.s32.totalorder %s90, %s91
    %p102 = scmp.eq.s32.totalorder %s14, 0
    %p103 = por %p101, %p102
    %p104 = scmp.ne.s32.totalorder %s90, %s91
    %p105 = scmp.eq.s32.totalorder %s15, 3
    %p106 = por %p104, %p105
    %p108 = scmp.ne.s32.totalorder %s91, %s107
    %p109 = scmp.eq.s32.totalorder %s15, 0
    %p110 = por %p108, %p109
    %p111 = scmp.le.s32.totalorder 1, %s9
    %p112 = scmp.lt.s32.totalorder %s9, 5
    %p113 = pnand %p111, %p112
    %p114 = pneg %p113
    // Predicated region
    $region9: #{residual_forward.5} parent=5 // pred_check
      _
    $region10: #{residual_forward.5} parent=5 // pred_check_branch
      %116 = sbr.rel (%p113) target = $region12
    $region11: #{residual_forward.5} parent=5 // pred_region
      %s117 = ssub.s32 %s9, 1
      // Predicated region
      $region13: #{residual_forward.5} parent=11 // pred_check
        %p118 = pneg %p56
      $region14: #{residual_forward.5} parent=11 // pred_check_branch
        %120 = sbr.rel (%p118) target = $region16
      $region15: #{residual_forward.5} parent=11 // pred_region
        _
      $region16: #{residual_forward.5} parent=11 // pred_fallthru
        _
      // Predicated region
      $region17: #{residual_forward.5} parent=11 // pred_check
        %p121 = pneg %p77
      $region18: #{residual_forward.5} parent=11 // pred_check_branch
        %123 = sbr.rel (%p121) target = $region20
      $region19: #{residual_forward.5} parent=11 // pred_region
        _
      $region20: #{residual_forward.5} parent=11 // pred_fallthru
        _
    $region12: #{residual_forward.5} parent=5 // pred_fallthru
      _
    %p124 = scmp.lt.s32.totalorder %s9, 4
    // Predicated region
    $region21: #{residual_forward.5} parent=5 // pred_check
      %p125 = pneg %p124
    $region22: #{residual_forward.5} parent=5 // pred_check_branch
      %127 = sbr.rel (%p125) target = $region24
    $region23: #{residual_forward.5} parent=5 // pred_region
      // Predicated region
      $region25: #{residual_forward.5} parent=23 // pred_check
        %p128 = pneg %p29
      $region26: #{residual_forward.5} parent=23 // pred_check_branch
        %130 = sbr.rel (%p128) target = $region28
      $region27: #{residual_forward.5} parent=23 // pred_region
        %s131 = smul.u32 16, %s9
        %p132 = scmp.lt.s32.totalorder %s131, 63
        %s133 = scalar_select %p132, %s131, 63
        %s134 = smul.addr %s133, 8
        %s135 = scalar_lea.vmem %s0, %s134
        %s136 = smul.u32 16, %s9
      $region28: #{residual_forward.5} parent=23 // pred_fallthru
        _
    $region24: #{residual_forward.5} parent=5 // pred_fallthru
      _
    %p137 = scmp.le.s32.totalorder 1, %s9
    %p138 = scmp.lt.s32.totalorder %s9, 5
    %p139 = pnand %p137, %p138
    %p140 = pneg %p139
    // Predicated region
    $region29: #{residual_forward.5} parent=5 // pred_check
      _
    $region30: #{residual_forward.5} parent=5 // pred_check_branch
      %142 = sbr.rel (%p139) target = $region32
    $region31: #{residual_forward.5} parent=5 // pred_region
      %s143 = ssub.s32 %s9, 1
      %s144 = smul.u32 16, %s14
      %p145 = scmp.lt.s32.totalorder %s144, 63
      %s146 = scalar_select %p145, %s144, 63
      %s147 = smul.addr %s146, 8
      %s148 = scalar_lea.vmem %s0, %s147
      %p149 = pneg %p35
      %p150 = pneg %p32
      %p151 = pneg %p56
      %p152 = pneg %p53
      %p153 = pneg %p77
      %p154 = pneg %p74
      %p155 = pneg %p103
      %p156 = pneg %p100
      %s157 = smul.u32 16, %s14
      %p158 = scmp.lt.s32.totalorder %s157, 63
      %s159 = scalar_select %p158, %s157, 63
      %s160 = smul.addr %s159, 8
      %s161 = scalar_lea.vmem %s3, %s160
      %s162 = smul.u32 16, %s14
      %p163 = scmp.lt.s32.totalorder %s162, 63
      %s164 = scalar_select %p163, %s162, 63
      %s165 = smul.addr %s164, 8
      %s166 = scalar_lea.vmem %s0, %s165
      %s167 = smul.u32 16, %s14
      %s168 = smul.u32 16, %s14
      %p169 = scmp.lt.s32.totalorder %s168, 63
      %s170 = scalar_select %p169, %s168, 63
      %s171 = smul.addr %s170, 8
      %s172 = scalar_lea.vmem %s3, %s171
      %s173 = smul.u32 16, %s14
      %v174 = vld [vmem:[%s166] sm:$0xff]
      %v175 = vld [vmem:[%s166 + $0x8] sm:$0xff]
      %v176 = vld [vmem:[%s166 + $0x10] sm:$0xff]
      %v177 = vld [vmem:[%s166 + $0x18] sm:$0xff]
      %v178 = vld [vmem:[%s166 + $0x20] sm:$0xff]
      %v179 = vld [vmem:[%s166 + $0x28] sm:$0xff]
      %v180 = vld [vmem:[%s166 + $0x30] sm:$0xff]
      %v181 = vld [vmem:[%s166 + $0x38] sm:$0xff]
      %v182 = vld [vmem:[%s166 + $0x40] sm:$0xff]
      %v183 = vld [vmem:[%s166 + $0x48] sm:$0xff]
      %v184 = vld [vmem:[%s166 + $0x50] sm:$0xff]
      %v185 = vld [vmem:[%s166 + $0x58] sm:$0xff]
      %v186 = vld [vmem:[%s166 + $0x60] sm:$0xff]
      %v187 = vld [vmem:[%s166 + $0x68] sm:$0xff]
      %v188 = vld [vmem:[%s166 + $0x70] sm:$0xff]
      %v189 = vld [vmem:[%s166 + $0x78] sm:$0xff]
      %v190 = vld [vmem:[%s1] sm:$0x1]
      %v192 = vlaneseq
      %v193 = vshrl.u32 %v192, 7
      %v194 = vsub.s32 0, %v193
      %v195 = vrot.slane %v190, %v194
      %v197 = vmul.f32 %v174, %v195
      %v198 = vmul.f32 %v175, %v195
      %v199 = vmul.f32 %v176, %v195
      %v200 = vmul.f32 %v177, %v195
      %v201 = vmul.f32 %v178, %v195
      %v202 = vmul.f32 %v179, %v195
      %v203 = vmul.f32 %v180, %v195
      %v204 = vmul.f32 %v181, %v195
      %v205 = vmul.f32 %v182, %v195
      %v206 = vmul.f32 %v183, %v195
      %v207 = vmul.f32 %v184, %v195
      %v208 = vmul.f32 %v185, %v195
      %v209 = vmul.f32 %v186, %v195
      %v210 = vmul.f32 %v187, %v195
      %v211 = vmul.f32 %v188, %v195
      %v212 = vmul.f32 %v189, %v195
      %v213 = vld [vmem:[%s2] sm:$0x1]
      %v215 = vlaneseq
      %v216 = vshrl.u32 %v215, 7
      %v217 = vsub.s32 0, %v216
      %v218 = vrot.slane %v213, %v217
      %v220 = vadd.f32 %v197, %v218
      %v221 = vadd.f32 %v198, %v218
      %v222 = vadd.f32 %v199, %v218
      %v223 = vadd.f32 %v200, %v218
      %v224 = vadd.f32 %v201, %v218
      %v225 = vadd.f32 %v202, %v218
      %v226 = vadd.f32 %v203, %v218
      %v227 = vadd.f32 %v204, %v218
      %v228 = vadd.f32 %v205, %v218
      %v229 = vadd.f32 %v206, %v218
      %v230 = vadd.f32 %v207, %v218
      %v231 = vadd.f32 %v208, %v218
      %v232 = vadd.f32 %v209, %v218
      %v233 = vadd.f32 %v210, %v218
      %v234 = vadd.f32 %v211, %v218
      %v235 = vadd.f32 %v212, %v218
      %v236 = vmax.f32 %v220, 0.0
      %v237 = vmax.f32 %v221, 0.0
      %v238 = vmax.f32 %v222, 0.0
      %v239 = vmax.f32 %v223, 0.0
      %v240 = vmax.f32 %v224, 0.0
      %v241 = vmax.f32 %v225, 0.0
      %v242 = vmax.f32 %v226, 0.0
      %v243 = vmax.f32 %v227, 0.0
      %v244 = vmax.f32 %v228, 0.0
      %v245 = vmax.f32 %v229, 0.0
      %v246 = vmax.f32 %v230, 0.0
      %v247 = vmax.f32 %v231, 0.0
      %v248 = vmax.f32 %v232, 0.0
      %v249 = vmax.f32 %v233, 0.0
      %v250 = vmax.f32 %v234, 0.0
      %v251 = vmax.f32 %v235, 0.0
      %252 = vst [vmem:[%s172] sm:$0xff] %v236
      %253 = vst [vmem:[%s172 + $0x8] sm:$0xff] %v237
      %254 = vst [vmem:[%s172 + $0x10] sm:$0xff] %v238
      %255 = vst [vmem:[%s172 + $0x18] sm:$0xff] %v239
      %256 = vst [vmem:[%s172 + $0x20] sm:$0xff] %v240
      %257 = vst [vmem:[%s172 + $0x28] sm:$0xff] %v241
      %258 = vst [vmem:[%s172 + $0x30] sm:$0xff] %v242
      %259 = vst [vmem:[%s172 + $0x38] sm:$0xff] %v243
      %260 = vst [vmem:[%s172 + $0x40] sm:$0xff] %v244
      %261 = vst [vmem:[%s172 + $0x48] sm:$0xff] %v245
      %262 = vst [vmem:[%s172 + $0x50] sm:$0xff] %v246
      %263 = vst [vmem:[%s172 + $0x58] sm:$0xff] %v247
      %264 = vst [vmem:[%s172 + $0x60] sm:$0xff] %v248
      %265 = vst [vmem:[%s172 + $0x68] sm:$0xff] %v249
      %266 = vst [vmem:[%s172 + $0x70] sm:$0xff] %v250
      %267 = vst [vmem:[%s172 + $0x78] sm:$0xff] %v251
      %s268 = smul.u32 16, %s14
      %p269 = scmp.lt.s32.totalorder %s268, 63
      %s270 = scalar_select %p269, %s268, 63
      %s271 = smul.addr %s270, 8
      %s272 = scalar_lea.vmem %s3, %s271
      // Predicated region
      $region33: #{residual_forward.5} parent=31 // pred_check
        %p273 = pneg %p100
      $region34: #{residual_forward.5} parent=31 // pred_check_branch
        %275 = sbr.rel (%p273) target = $region36
      $region35: #{residual_forward.5} parent=31 // pred_region
        %s276 = smul.u32 16, %s14
      $region36: #{residual_forward.5} parent=31 // pred_fallthru
        _
    $region32: #{residual_forward.5} parent=5 // pred_fallthru
      _
    %p277 = scmp.le.s32.totalorder 2, %s9
    // Predicated region
    $region37: #{residual_forward.5} parent=5 // pred_check
      %p278 = pneg %p277
    $region38: #{residual_forward.5} parent=5 // pred_check_branch
      %280 = sbr.rel (%p278) target = $region40
    $region39: #{residual_forward.5} parent=5 // pred_region
      %s281 = ssub.s32 %s9, 2
      // Predicated region
      $region41: #{residual_forward.5} parent=39 // pred_check
        %p282 = pneg %p106
      $region42: #{residual_forward.5} parent=39 // pred_check_branch
        %284 = sbr.rel (%p282) target = $region44
      $region43: #{residual_forward.5} parent=39 // pred_region
        %s285 = smul.u32 16, %s15
        %p286 = scmp.lt.s32.totalorder %s285, 63
        %s287 = scalar_select %p286, %s285, 63
        %s288 = smul.addr %s287, 8
        %s289 = scalar_lea.vmem %s3, %s288
      $region44: #{residual_forward.5} parent=39 // pred_fallthru
        _
    $region40: #{residual_forward.5} parent=5 // pred_fallthru
      _
  $region6: #{residual_forward.5} parent=0 // loop_footer
    %s13 = sadd.s32 1, %s9
  $region7: #{residual_forward.5} parent=0 // loop_footer_branch
    %8 = sbr.rel target = $region3
  $region8: #{residual_forward.5} parent=0 // loop_exit
    _

// kernel: residual_forward.7
$region0: #{residual_forward.7}
  #allocation0 [shape = 'u32[]', space=smem, size = 0x4, offset = 0x4, fixed_abs, tag = 'smem constant byte address 0x4 - core index']
  #allocation1 [shape = 'u32[144,128]{1,0:T(1,128)}', space=vmem, size = 0x12000, scoped, tag = 'internal scratch']
  %s0 = inlined_call_operand.vmem [shape: f32[512,128], index: 0, kind: input, shape index: {}]
  %s1 = inlined_call_operand.vmem [shape: f32[1,128], index: 1, kind: input, shape index: {}]
  %s2 = inlined_call_operand.vmem [shape: f32[1,128], index: 2, kind: input, shape index: {}]
  %s3 = inlined_call_operand.vmem [shape: f32[512,128], index: 3, kind: input, shape index: {}]
  %s4 = inlined_call_operand.vmem [shape: f32[512,128], index: 4, kind: output, shape index: {}]
  %s5 = sld [smem:[#allocation0]]
  $region49: #{residual_forward.7} parent=0
    _
  %s7 = ssub.s32 1, %s5
  %s8 = scalar_select 0, %s7, %s5
  loop: start=0, step=1, limit=6
  $region2: #{residual_forward.7} parent=0 // loop_pre_header
    _
  $region3: #{residual_forward.7} parent=0 // loop_header
    %s10 = sphi 0, %s14
    %p11 = scmp.ge.s32.totalorder %s10, 6
    %s20 = sphi 0, %s22
    %s23 = sphi 0, %s20
    %s24 = sphi 0, %s23
    %s40 = sphi 0, %s24
    %s44 = sphi 0, %s44
    %s46 = sphi 0, %s44
    %s47 = sphi 0, %s46
    %s61 = sphi 0, %s47
    %s65 = sphi 0, %s65
    %s67 = sphi 0, %s65
    %s68 = sphi 0, %s67
    %s82 = sphi 0, %s68
    %s88 = sphi 0, %s90
    %s91 = sphi 0, %s88
    %s92 = sphi 0, %s91
    %s108 = sphi 0, %s92
    %s114 = sphi 0, %s116
    %s117 = sphi 0, %s114
    %s118 = sphi 0, %s117
    %s134 = sphi 0, %s118
  $region4: #{residual_forward.7} parent=0 // loop_header_branch
    %13 = sbr.rel (%p11) target = $region8
  $region5: #{residual_forward.7} parent=0 // loop_body
    %s15 = ssub.s32 %s10, 1
    %s16 = ssub.s32 %s10, 2
    %s17 = sadd.s32 %s10, 1
    %s18 = ssub.s32 %s10, %s17
    %p19 = scmp.eq.s32.totalorder %s18, 0
    %s21 = sadd.s32 %s20, 1
    %s22 = scalar_select %p19, %s20, %s21
    %p25 = pneg %p19
    %p26 = scmp.eq.s32.totalorder %s10, 3
    %p27 = por %p25, %p26
    %p28 = scmp.ne.s32.totalorder %s20, %s23
    %p29 = scmp.eq.s32.totalorder %s10, 0
    %p30 = por %p28, %p29
    %p31 = scmp.ne.s32.totalorder %s20, %s23
    %p32 = scmp.eq.s32.totalorder %s15, 3
    %p33 = por %p31, %p32
    %p34 = scmp.ne.s32.totalorder %s23, %s24
    %p35 = scmp.eq.s32.totalorder %s15, 0
    %p36 = por %p34, %p35
    %p37 = scmp.ne.s32.totalorder %s23, %s24
    %p38 = scmp.eq.s32.totalorder %s16, 3
    %p39 = por %p37, %p38
    %p41 = scmp.ne.s32.totalorder %s24, %s40
    %p42 = scmp.eq.s32.totalorder %s16, 0
    %p43 = por %p41, %p42
    %s45 = sadd.s32 %s44, 1
    %p48 = scmp.eq.s32.totalorder %s10, 3
    %p49 = scmp.ne.s32.totalorder %s44, %s46
    %p50 = scmp.eq.s32.totalorder %s10, 0
    %p51 = por %p49, %p50
    %p52 = scmp.ne.s32.totalorder %s44, %s46
    %p53 = scmp.eq.s32.totalorder %s15, 3
    %p54 = por %p52, %p53
    %p55 = scmp.ne.s32.totalorder %s46, %s47
    %p56 = scmp.eq.s32.totalorder %s15, 0
    %p57 = por %p55, %p56
    %p58 = scmp.ne.s32.totalorder %s46, %s47
    %p59 = scmp.eq.s32.totalorder %s16, 3
    %p60 = por %p58, %p59
    %p62 = scmp.ne.s32.totalorder %s47, %s61
    %p63 = scmp.eq.s32.totalorder %s16, 0
    %p64 = por %p62, %p63
    %s66 = sadd.s32 %s65, 1
    %p69 = scmp.eq.s32.totalorder %s10, 3
    %p70 = scmp.ne.s32.totalorder %s65, %s67
    %p71 = scmp.eq.s32.totalorder %s10, 0
    %p72 = por %p70, %p71
    %p73 = scmp.ne.s32.totalorder %s65, %s67
    %p74 = scmp.eq.s32.totalorder %s15, 3
    %p75 = por %p73, %p74
    %p76 = scmp.ne.s32.totalorder %s67, %s68
    %p77 = scmp.eq.s32.totalorder %s15, 0
    %p78 = por %p76, %p77
    %p79 = scmp.ne.s32.totalorder %s67, %s68
    %p80 = scmp.eq.s32.totalorder %s16, 3
    %p81 = por %p79, %p80
    %p83 = scmp.ne.s32.totalorder %s68, %s82
    %p84 = scmp.eq.s32.totalorder %s16, 0
    %p85 = por %p83, %p84
    %s86 = ssub.s32 %s10, %s17
    %p87 = scmp.eq.s32.totalorder %s86, 0
    %s89 = sadd.s32 %s88, 1
    %s90 = scalar_select %p87, %s88, %s89
    %p93 = pneg %p87
    %p94 = scmp.eq.s32.totalorder %s10, 3
    %p95 = por %p93, %p94
    %p96 = scmp.ne.s32.totalorder %s88, %s91
    %p97 = scmp.eq.s32.totalorder %s10, 0
    %p98 = por %p96, %p97
    %p99 = scmp.ne.s32.totalorder %s88, %s91
    %p100 = scmp.eq.s32.totalorder %s15, 3
    %p101 = por %p99, %p100
    %p102 = scmp.ne.s32.totalorder %s91, %s92
    %p103 = scmp.eq.s32.totalorder %s15, 0
    %p104 = por %p102, %p103
    %p105 = scmp.ne.s32.totalorder %s91, %s92
    %p106 = scmp.eq.s32.totalorder %s16, 3
    %p107 = por %p105, %p106
    %p109 = scmp.ne.s32.totalorder %s92, %s108
    %p110 = scmp.eq.s32.totalorder %s16, 0
    %p111 = por %p109, %p110
    %s112 = ssub.s32 %s10, %s17
    %p113 = scmp.eq.s32.totalorder %s112, 0
    %s115 = sadd.s32 %s114, 1
    %s116 = scalar_select %p113, %s114, %s115
    %p119 = pneg %p113
    %p120 = scmp.eq.s32.totalorder %s10, 3
    %p121 = por %p119, %p120
    %p122 = scmp.ne.s32.totalorder %s114, %s117
    %p123 = scmp.eq.s32.totalorder %s10, 0
    %p124 = por %p122, %p123
    %p125 = scmp.ne.s32.totalorder %s114, %s117
    %p126 = scmp.eq.s32.totalorder %s15, 3
    %p127 = por %p125, %p126
    %p128 = scmp.ne.s32.totalorder %s117, %s118
    %p129 = scmp.eq.s32.totalorder %s15, 0
    %p130 = por %p128, %p129
    %p131 = scmp.ne.s32.totalorder %s117, %s118
    %p132 = scmp.eq.s32.totalorder %s16, 3
    %p133 = por %p131, %p132
    %p135 = scmp.ne.s32.totalorder %s118, %s134
    %p136 = scmp.eq.s32.totalorder %s16, 0
    %p137 = por %p135, %p136
    %p138 = scmp.le.s32.totalorder 1, %s10
    %p139 = scmp.lt.s32.totalorder %s10, 5
    %p140 = pnand %p138, %p139
    %p141 = pneg %p140
    // Predicated region
    $region9: #{residual_forward.7} parent=5 // pred_check
      _
    $region10: #{residual_forward.7} parent=5 // pred_check_branch
      %143 = sbr.rel (%p140) target = $region12
    $region11: #{residual_forward.7} parent=5 // pred_region
      %s144 = ssub.s32 %s10, 1
      // Predicated region
      $region13: #{residual_forward.7} parent=11 // pred_check
        %p145 = pneg %p57
      $region14: #{residual_forward.7} parent=11 // pred_check_branch
        %147 = sbr.rel (%p145) target = $region16
      $region15: #{residual_forward.7} parent=11 // pred_region
        _
      $region16: #{residual_forward.7} parent=11 // pred_fallthru
        _
      // Predicated region
      $region17: #{residual_forward.7} parent=11 // pred_check
        %p148 = pneg %p78
      $region18: #{residual_forward.7} parent=11 // pred_check_branch
        %150 = sbr.rel (%p148) target = $region20
      $region19: #{residual_forward.7} parent=11 // pred_region
        _
      $region20: #{residual_forward.7} parent=11 // pred_fallthru
        _
    $region12: #{residual_forward.7} parent=5 // pred_fallthru
      _
    %p151 = scmp.lt.s32.totalorder %s10, 4
    // Predicated region
    $region21: #{residual_forward.7} parent=5 // pred_check
      %p152 = pneg %p151
    $region22: #{residual_forward.7} parent=5 // pred_check_branch
      %154 = sbr.rel (%p152) target = $region24
    $region23: #{residual_forward.7} parent=5 // pred_region
      // Predicated region
      $region25: #{residual_forward.7} parent=23 // pred_check
        %p155 = pneg %p30
      $region26: #{residual_forward.7} parent=23 // pred_check_branch
        %157 = sbr.rel (%p155) target = $region28
      $region27: #{residual_forward.7} parent=23 // pred_region
        %s158 = smul.u32 16, %s10
        %p159 = scmp.lt.s32.totalorder %s158, 63
        %s160 = scalar_select %p159, %s158, 63
        %s161 = smul.addr %s160, 8
        %s162 = scalar_lea.vmem %s0, %s161
        %s163 = smul.u32 16, %s10
      $region28: #{residual_forward.7} parent=23 // pred_fallthru
        _
      // Predicated region
      $region29: #{residual_forward.7} parent=23 // pred_check
        %p164 = pneg %p98
      $region30: #{residual_forward.7} parent=23 // pred_check_branch
        %166 = sbr.rel (%p164) target = $region32
      $region31: #{residual_forward.7} parent=23 // pred_region
        %s167 = smul.u32 16, %s10
        %p168 = scmp.lt.s32.totalorder %s167, 63
        %s169 = scalar_select %p168, %s167, 63
        %s170 = smul.addr %s169, 8
        %s171 = scalar_lea.vmem %s3, %s170
        %s172 = smul.u32 16, %s10
      $region32: #{residual_forward.7} parent=23 // pred_fallthru
        _
    $region24: #{residual_forward.7} parent=5 // pred_fallthru
      _
    %p173 = scmp.le.s32.totalorder 1, %s10
    %p174 = scmp.lt.s32.totalorder %s10, 5
    %p175 = pnand %p173, %p174
    %p176 = pneg %p175
    // Predicated region
    $region33: #{residual_forward.7} parent=5 // pred_check
      _
    $region34: #{residual_forward.7} parent=5 // pred_check_branch
      %178 = sbr.rel (%p175) target = $region36
    $region35: #{residual_forward.7} parent=5 // pred_region
      %s179 = ssub.s32 %s10, 1
      %s180 = smul.u32 16, %s15
      %p181 = scmp.lt.s32.totalorder %s180, 63
      %s182 = scalar_select %p181, %s180, 63
      %s183 = smul.addr %s182, 8
      %s184 = scalar_lea.vmem %s0, %s183
      %p185 = pneg %p36
      %p186 = pneg %p33
      %p187 = pneg %p57
      %p188 = pneg %p54
      %p189 = pneg %p78
      %p190 = pneg %p75
      %s191 = smul.u32 16, %s15
      %p192 = scmp.lt.s32.totalorder %s191, 63
      %s193 = scalar_select %p192, %s191, 63
      %s194 = smul.addr %s193, 8
      %s195 = scalar_lea.vmem %s3, %s194
      %p196 = pneg %p104
      %p197 = pneg %p101
      %p198 = pneg %p130
      %p199 = pneg %p127
      %s200 = smul.u32 16, %s15
      %p201 = scmp.lt.s32.totalorder %s200, 63
      %s202 = scalar_select %p201, %s200, 63
      %s203 = smul.addr %s202, 8
      %s204 = scalar_lea.vmem %s4, %s203
      %s205 = smul.u32 16, %s15
      %p206 = scmp.lt.s32.totalorder %s205, 63
      %s207 = scalar_select %p206, %s205, 63
      %s208 = smul.addr %s207, 8
      %s209 = scalar_lea.vmem %s0, %s208
      %s210 = smul.u32 16, %s15
      %s211 = smul.u32 16, %s15
      %p212 = scmp.lt.s32.totalorder %s211, 63
      %s213 = scalar_select %p212, %s211, 63
      %s214 = smul.addr %s213, 8
      %s215 = scalar_lea.vmem %s3, %s214
      %s216 = smul.u32 16, %s15
      %s217 = smul.u32 16, %s15
      %p218 = scmp.lt.s32.totalorder %s217, 63
      %s219 = scalar_select %p218, %s217, 63
      %s220 = smul.addr %s219, 8
      %s221 = scalar_lea.vmem %s4, %s220
      %s222 = smul.u32 16, %s15
      %v223 = vld [vmem:[%s209] sm:$0xff]
      %v224 = vld [vmem:[%s209 + $0x8] sm:$0xff]
      %v225 = vld [vmem:[%s209 + $0x10] sm:$0xff]
      %v226 = vld [vmem:[%s209 + $0x18] sm:$0xff]
      %v227 = vld [vmem:[%s209 + $0x20] sm:$0xff]
      %v228 = vld [vmem:[%s209 + $0x28] sm:$0xff]
      %v229 = vld [vmem:[%s209 + $0x30] sm:$0xff]
      %v230 = vld [vmem:[%s209 + $0x38] sm:$0xff]
      %v231 = vld [vmem:[%s209 + $0x40] sm:$0xff]
      %v232 = vld [vmem:[%s209 + $0x48] sm:$0xff]
      %v233 = vld [vmem:[%s209 + $0x50] sm:$0xff]
      %v234 = vld [vmem:[%s209 + $0x58] sm:$0xff]
      %v235 = vld [vmem:[%s209 + $0x60] sm:$0xff]
      %v236 = vld [vmem:[%s209 + $0x68] sm:$0xff]
      %v237 = vld [vmem:[%s209 + $0x70] sm:$0xff]
      %v238 = vld [vmem:[%s209 + $0x78] sm:$0xff]
      %v239 = vld [vmem:[%s1] sm:$0x1]
      %v241 = vlaneseq
      %v242 = vshrl.u32 %v241, 7
      %v243 = vsub.s32 0, %v242
      %v244 = vrot.slane %v239, %v243
      %v246 = vmul.f32 %v223, %v244
      %v247 = vmul.f32 %v224, %v244
      %v248 = vmul.f32 %v225, %v244
      %v249 = vmul.f32 %v226, %v244
      %v250 = vmul.f32 %v227, %v244
      %v251 = vmul.f32 %v228, %v244
      %v252 = vmul.f32 %v229, %v244
      %v253 = vmul.f32 %v230, %v244
      %v254 = vmul.f32 %v231, %v244
      %v255 = vmul.f32 %v232, %v244
      %v256 = vmul.f32 %v233, %v244
      %v257 = vmul.f32 %v234, %v244
      %v258 = vmul.f32 %v235, %v244
      %v259 = vmul.f32 %v236, %v244
      %v260 = vmul.f32 %v237, %v244
      %v261 = vmul.f32 %v238, %v244
      %v262 = vld [vmem:[%s2] sm:$0x1]
      %v264 = vlaneseq
      %v265 = vshrl.u32 %v264, 7
      %v266 = vsub.s32 0, %v265
      %v267 = vrot.slane %v262, %v266
      %v269 = vadd.f32 %v246, %v267
      %v270 = vadd.f32 %v247, %v267
      %v271 = vadd.f32 %v248, %v267
      %v272 = vadd.f32 %v249, %v267
      %v273 = vadd.f32 %v250, %v267
      %v274 = vadd.f32 %v251, %v267
      %v275 = vadd.f32 %v252, %v267
      %v276 = vadd.f32 %v253, %v267
      %v277 = vadd.f32 %v254, %v267
      %v278 = vadd.f32 %v255, %v267
      %v279 = vadd.f32 %v256, %v267
      %v280 = vadd.f32 %v257, %v267
      %v281 = vadd.f32 %v258, %v267
      %v282 = vadd.f32 %v259, %v267
      %v283 = vadd.f32 %v260, %v267
      %v284 = vadd.f32 %v261, %v267
      %v285 = vld [vmem:[%s215] sm:$0xff]
      %v286 = vld [vmem:[%s215 + $0x8] sm:$0xff]
      %v287 = vld [vmem:[%s215 + $0x10] sm:$0xff]
      %v288 = vld [vmem:[%s215 + $0x18] sm:$0xff]
      %v289 = vld [vmem:[%s215 + $0x20] sm:$0xff]
      %v290 = vld [vmem:[%s215 + $0x28] sm:$0xff]
      %v291 = vld [vmem:[%s215 + $0x30] sm:$0xff]
      %v292 = vld [vmem:[%s215 + $0x38] sm:$0xff]
      %v293 = vld [vmem:[%s215 + $0x40] sm:$0xff]
      %v294 = vld [vmem:[%s215 + $0x48] sm:$0xff]
      %v295 = vld [vmem:[%s215 + $0x50] sm:$0xff]
      %v296 = vld [vmem:[%s215 + $0x58] sm:$0xff]
      %v297 = vld [vmem:[%s215 + $0x60] sm:$0xff]
      %v298 = vld [vmem:[%s215 + $0x68] sm:$0xff]
      %v299 = vld [vmem:[%s215 + $0x70] sm:$0xff]
      %v300 = vld [vmem:[%s215 + $0x78] sm:$0xff]
      %v301 = vadd.f32 %v269, %v285
      %v302 = vadd.f32 %v270, %v286
      %v303 = vadd.f32 %v271, %v287
      %v304 = vadd.f32 %v272, %v288
      %v305 = vadd.f32 %v273, %v289
      %v306 = vadd.f32 %v274, %v290
      %v307 = vadd.f32 %v275, %v291
      %v308 = vadd.f32 %v276, %v292
      %v309 = vadd.f32 %v277, %v293
      %v310 = vadd.f32 %v278, %v294
      %v311 = vadd.f32 %v279, %v295
      %v312 = vadd.f32 %v280, %v296
      %v313 = vadd.f32 %v281, %v297
      %v314 = vadd.f32 %v282, %v298
      %v315 = vadd.f32 %v283, %v299
      %v316 = vadd.f32 %v284, %v300
      %v317 = vmax.f32 %v301, 0.0
      %v318 = vmax.f32 %v302, 0.0
      %v319 = vmax.f32 %v303, 0.0
      %v320 = vmax.f32 %v304, 0.0
      %v321 = vmax.f32 %v305, 0.0
      %v322 = vmax.f32 %v306, 0.0
      %v323 = vmax.f32 %v307, 0.0
      %v324 = vmax.f32 %v308, 0.0
      %v325 = vmax.f32 %v309, 0.0
      %v326 = vmax.f32 %v310, 0.0
      %v327 = vmax.f32 %v311, 0.0
      %v328 = vmax.f32 %v312, 0.0
      %v329 = vmax.f32 %v313, 0.0
      %v330 = vmax.f32 %v314, 0.0
      %v331 = vmax.f32 %v315, 0.0
      %v332 = vmax.f32 %v316, 0.0
      %333 = vst [vmem:[%s221] sm:$0xff] %v317
      %334 = vst [vmem:[%s221 + $0x8] sm:$0xff] %v318
      %335 = vst [vmem:[%s221 + $0x10] sm:$0xff] %v319
      %336 = vst [vmem:[%s221 + $0x18] sm:$0xff] %v320
      %337 = vst [vmem:[%s221 + $0x20] sm:$0xff] %v321
      %338 = vst [vmem:[%s221 + $0x28] sm:$0xff] %v322
      %339 = vst [vmem:[%s221 + $0x30] sm:$0xff] %v323
      %340 = vst [vmem:[%s221 + $0x38] sm:$0xff] %v324
      %341 = vst [vmem:[%s221 + $0x40] sm:$0xff] %v325
      %342 = vst [vmem:[%s221 + $0x48] sm:$0xff] %v326
      %343 = vst [vmem:[%s221 + $0x50] sm:$0xff] %v327
      %344 = vst [vmem:[%s221 + $0x58] sm:$0xff] %v328
      %345 = vst [vmem:[%s221 + $0x60] sm:$0xff] %v329
      %346 = vst [vmem:[%s221 + $0x68] sm:$0xff] %v330
      %347 = vst [vmem:[%s221 + $0x70] sm:$0xff] %v331
      %348 = vst [vmem:[%s221 + $0x78] sm:$0xff] %v332
      %s349 = smul.u32 16, %s15
      %p350 = scmp.lt.s32.totalorder %s349, 63
      %s351 = scalar_select %p350, %s349, 63
      %s352 = smul.addr %s351, 8
      %s353 = scalar_lea.vmem %s4, %s352
      // Predicated region
      $region37: #{residual_forward.7} parent=35 // pred_check
        %p354 = pneg %p127
      $region38: #{residual_forward.7} parent=35 // pred_check_branch
        %356 = sbr.rel (%p354) target = $region40
      $region39: #{residual_forward.7} parent=35 // pred_region
        %s357 = smul.u32 16, %s15
      $region40: #{residual_forward.7} parent=35 // pred_fallthru
        _
    $region36: #{residual_forward.7} parent=5 // pred_fallthru
      _
    %p358 = scmp.le.s32.totalorder 2, %s10
    // Predicated region
    $region41: #{residual_forward.7} parent=5 // pred_check
      %p359 = pneg %p358
    $region42: #{residual_forward.7} parent=5 // pred_check_branch
      %361 = sbr.rel (%p359) target = $region44
    $region43: #{residual_forward.7} parent=5 // pred_region
      %s362 = ssub.s32 %s10, 2
      // Predicated region
      $region45: #{residual_forward.7} parent=43 // pred_check
        %p363 = pneg %p133
      $region46: #{residual_forward.7} parent=43 // pred_check_branch
        %365 = sbr.rel (%p363) target = $region48
      $region47: #{residual_forward.7} parent=43 // pred_region
        %s366 = smul.u32 16, %s16
        %p367 = scmp.lt.s32.totalorder %s366, 63
        %s368 = scalar_select %p367, %s366, 63
        %s369 = smul.addr %s368, 8
        %s370 = scalar_lea.vmem %s4, %s369
      $region48: #{residual_forward.7} parent=43 // pred_fallthru
        _
    $region44: #{residual_forward.7} parent=5 // pred_fallthru
      _
  $region6: #{residual_forward.7} parent=0 // loop_footer
    %s14 = sadd.s32 1, %s10
  $region7: #{residual_forward.7} parent=0 // loop_footer_branch
    %9 = sbr.rel target = $region3
  $region8: #{residual_forward.7} parent=0 // loop_exit
    _

</llo_original>
